<compile_context>
chip_gen: v7x
topology: tpu7x:2x2x1
jax: 0.10.0
libtpu: 0.0.40
codegen_flags: <defaults>
</compile_context>

<pallas_src>
import functools

import jax
import jax.numpy as jnp
from jax.experimental import pallas as pl
from jax.experimental.pallas import tpu as pltpu


def _cdiv(a, b):
    return -(-a // b)


def _round_up(a, b):
    return _cdiv(a, b) * b


def _lora_qkv_kernel(x_ref, wqkv_ref, bias_ref, aqv_ref, bq_ref, bv_ref, o_ref,
                     *, dim, rank, compute_dtype):
    # x_ref: (tm, C) in the caller's dtype; cast to bf16 here so the wrapper
    # never writes a casted copy of x back to HBM (VPU cast hides under MXU).
    x = x_ref[...].astype(compute_dtype)

    # Fused LoRA A projection: one (tm, C) @ (C, 2r) MXU pass replaces two
    # rank-r dots whose N=r would each pad to a full MXU lane tile.
    xa = jnp.dot(x, aqv_ref[...], preferred_element_type=jnp.float32)  # (tm, 2r)

    # Rank-r B expansion on the VPU (r broadcasted FMAs per slab).  On the MXU
    # the K=r contraction pads to full depth and wastes a full pass per dot.
    bq = bq_ref[...]   # (r, dim) f32
    bv = bv_ref[...]   # (r, dim) f32
    new_q = xa[:, 0:1] * bq[0:1, :]
    new_v = xa[:, rank:rank + 1] * bv[0:1, :]
    for kk in range(1, rank):
        new_q = new_q + xa[:, kk:kk + 1] * bq[kk:kk + 1, :]
        new_v = new_v + xa[:, rank + kk:rank + kk + 1] * bv[kk:kk + 1, :]

    # Base projection as three C-wide slab dots with fused epilogue + store,
    # so a (tm, 3C) f32 intermediate is never materialized in VMEM.
    q = jnp.dot(x, wqkv_ref[:, :dim], preferred_element_type=jnp.float32)
    o_ref[:, :dim] = (q + bias_ref[:, :dim] + new_q).astype(o_ref.dtype)

    k = jnp.dot(x, wqkv_ref[:, dim:2 * dim], preferred_element_type=jnp.float32)
    o_ref[:, dim:2 * dim] = (k + bias_ref[:, dim:2 * dim]).astype(o_ref.dtype)

    v = jnp.dot(x, wqkv_ref[:, 2 * dim:], preferred_element_type=jnp.float32)
    o_ref[:, 2 * dim:] = (v + bias_ref[:, 2 * dim:] + new_v).astype(o_ref.dtype)


def lora_qkv(x, w_qkv_t, b_qkv, a_q_t, b_q_t, a_v_t, b_v_t, *, tm=512,
             compute_dtype=jnp.bfloat16, out_dtype=None):
    """x: (B, H, W, C).  Returns (B, H, W, 3*C) in out_dtype (default x.dtype).

    Weight args follow PyTorch Linear convention pre-transposed:
      w_qkv_t: (C, 3C), b_qkv: (3C,), a_*_t: (C, r), b_*_t: (r, C).
    Callers that reuse the adapters should cache bf16 weights and pass them
    directly (the wrapper only casts when dtypes differ).
    """
    B, H, W, C = x.shape
    M = B * H * W
    r = a_q_t.shape[1]
    assert w_qkv_t.shape == (C, 3 * C), w_qkv_t.shape
    assert a_q_t.shape == (C, r) and a_v_t.shape == (C, r)
    assert b_q_t.shape == (r, C) and b_v_t.shape == (r, C)
    assert b_qkv.shape == (3 * C,)
    # Lane-aligned, unmasked q/k/v slab stores need C % 128 == 0 (true for all
    # real SAM image-encoder dims: 768 / 1024 / 1280).
    assert C % 128 == 0, f"C={C} must be a multiple of 128"

    if out_dtype is None:
        out_dtype = x.dtype   # pass compute_dtype here when downstream is bf16

    # Operand prep: x is NOT cast here (cast happens in-kernel); weights cast
    # only if needed. LoRA A mats are fused into one (C, 2r) matrix.
    wqkv = w_qkv_t if w_qkv_t.dtype == compute_dtype else w_qkv_t.astype(compute_dtype)
    aqv = jnp.concatenate([a_q_t, a_v_t], axis=1)
    aqv = aqv if aqv.dtype == compute_dtype else aqv.astype(compute_dtype)
    bq = b_q_t.astype(jnp.float32)     # B mats stay f32: tiny, consumed by VPU
    bv = b_v_t.astype(jnp.float32)
    bias2d = b_qkv.reshape(1, 3 * C).astype(jnp.float32)

    in_bytes = jnp.dtype(x.dtype).itemsize
    out_bytes = jnp.dtype(out_dtype).itemsize
    cb = jnp.dtype(compute_dtype).itemsize

    # VMEM cap: physical capacity minus headroom (never pin at the physical
    # limit -- Mosaic needs internal scratch).  Conservative default is below
    # v7x's 64 MiB/TC; v5e/v6e (128 MiB) get a much larger cap when queryable.
    vmem_cap = 56 << 20
    if hasattr(pltpu, "get_tpu_info"):
        try:
            phys = int(pltpu.get_tpu_info().vmem_capacity_bytes)
            vmem_cap = max(32 << 20, min(int(phys * 0.85), phys - (8 << 20)))
        except Exception:  # budgeting heuristic only; semantics unaffected
            pass

    def vmem_needed(tm_, single_buffer):
        inv = (C * 3 * C + C * 2 * r) * cb + (2 * r * C + 3 * C) * 4
        if not single_buffer:
            inv *= 2                                      # double-buffered invariants
        tiles = 2 * tm_ * C * in_bytes + 2 * tm_ * 3 * C * out_bytes
        temps = tm_ * C * cb + 3 * tm_ * C * 4 + tm_ * 2 * r * 4
        return inv + tiles + temps + (4 << 20)            # + internal scratch slack

    # Row tile: multiple of 16 (bf16 packs 16 sublanes); pad rows rather than
    # inflating tm to M.  Shrink tm if the (conservative) footprint overflows.
    tm = int(tm)
    tm = min(tm, _round_up(M, 16))
    tm = max(16, (tm // 16) * 16)
    while tm > 64 and vmem_needed(tm, False) > vmem_cap:
        tm = max(64, ((tm // 2) // 16) * 16)

    grid_m = _cdiv(M, tm)
    # v7x megacore shards the grid across 2 TCs: prefer an even multi-step grid.
    if grid_m > 1 and grid_m % 2 == 1:
        tm_even = max(16, _round_up(_cdiv(M, grid_m + 1), 16))
        if tm_even >= 128:
            tm = tm_even
            grid_m = _cdiv(M, tm)

    m_pad = grid_m * tm
    x2d = x.reshape(M, C)
    if m_pad != M:
        x2d = jnp.pad(x2d, ((0, m_pad - M), (0, 0)))

    flops = 2 * M * C * 3 * C + 2 * M * C * 2 * r + 2 * M * r * 2 * C
    bytes_accessed = (M * C * in_bytes + M * 3 * C * out_bytes
                      + (C * 3 * C + C * 2 * r) * cb + (2 * r * C + 3 * C) * 4)
    cost = pl.CostEstimate(flops=flops, transcendentals=0,
                           bytes_accessed=bytes_accessed)

    kernel = functools.partial(_lora_qkv_kernel, dim=C, rank=r,
                               compute_dtype=compute_dtype)

    def _call(single_buffer):
        if single_buffer:
            def inv_spec(shape):
                # Grid-invariant operand: one VMEM buffer, DMA'd once.
                return pl.BlockSpec(shape, lambda i: (0, 0),
                                    pipeline_mode=pl.Buffered(1))
        else:
            def inv_spec(shape):
                return pl.BlockSpec(shape, lambda i: (0, 0))
        vmem_limit = int(min(max(vmem_needed(tm, single_buffer), 32 << 20),
                             vmem_cap))
        return pl.pallas_call(
            kernel,
            out_shape=jax.ShapeDtypeStruct((m_pad, 3 * C), out_dtype),
            grid_spec=pltpu.PrefetchScalarGridSpec(
                num_scalar_prefetch=0,
                grid=(grid_m,),
                in_specs=[
                    pl.BlockSpec((tm, C), lambda i: (i, 0)),   # x rows (orig dtype)
                    inv_spec((C, 3 * C)),                       # W_qkv^T  (bf16)
                    inv_spec((1, 3 * C)),                       # bias     (f32)
                    inv_spec((C, 2 * r)),                       # [A_q|A_v]^T (bf16)
                    inv_spec((r, C)),                           # B_q^T    (f32, VPU)
                    inv_spec((r, C)),                           # B_v^T    (f32, VPU)
                ],
                out_specs=pl.BlockSpec((tm, 3 * C), lambda i: (i, 0)),
            ),
            compiler_params=pltpu.CompilerParams(
                dimension_semantics=("parallel",),   # megacore-shards M on v7x
                vmem_limit_bytes=vmem_limit),
            cost_estimate=cost,
        )(x2d, wqkv, bias2d, aqv, bq, bv)

    if hasattr(pl, "Buffered"):
        try:
            out2d = _call(True)
        except (pltpu.LoweringException, NotImplementedError, ValueError):
            # Narrow fallback: only when Buffered(1) on an invariant operand is
            # rejected.  Genuine shape/semantic errors reproduce (and surface)
            # in the identical double-buffered path below.
            out2d = _call(False)
    else:
        out2d = _call(False)

    if m_pad != M:
        out2d = out2d[:M]
    return out2d.reshape(B, H, W, 3 * C)


def reference_lora_qkv(x, w_qkv_t, b_qkv, a_q_t, b_q_t, a_v_t, b_v_t):
    """Pure-JAX f32 reference matching the PyTorch forward."""
    C = x.shape[-1]
    qkv = jnp.einsum("bhwc,cd->bhwd", x, w_qkv_t) + b_qkv
    new_q = jnp.einsum("bhwr,rc->bhwc",
                       jnp.einsum("bhwc,cr->bhwr", x, a_q_t), b_q_t)
    new_v = jnp.einsum("bhwr,rc->bhwc",
                       jnp.einsum("bhwc,cr->bhwr", x, a_v_t), b_v_t)
    qkv = qkv.at[..., :C].add(new_q)
    qkv = qkv.at[..., -C:].add(new_v)
    return qkv


if __name__ == "__main__":
    # Small ViT-like shapes: batch=2, spatial 8x8, dim=128 (lane-aligned so the
    # q/k/v slab writes hit the unmasked path), LoRA rank=4.
    B, H, W, C, R = 2, 8, 8, 128, 4

    key = jax.random.PRNGKey(0)
    ks = jax.random.split(key, 7)

    x = jax.random.normal(ks[0], (B, H, W, C), dtype=jnp.float32)

    # PyTorch Linear stores weight as (out, in); pre-transpose to (in, out).
    w_qkv = jax.random.normal(ks[1], (3 * C, C), dtype=jnp.float32) * 0.05
    b_qkv = jax.random.normal(ks[2], (3 * C,), dtype=jnp.float32) * 0.05
    a_q = jax.random.normal(ks[3], (R, C), dtype=jnp.float32) * 0.05   # linear_a_q.weight
    b_q = jax.random.normal(ks[4], (C, R), dtype=jnp.float32) * 0.05   # linear_b_q.weight
    a_v = jax.random.normal(ks[5], (R, C), dtype=jnp.float32) * 0.05   # linear_a_v.weight
    b_v = jax.random.normal(ks[6], (C, R), dtype=jnp.float32) * 0.05   # linear_b_v.weight

    w_qkv_t = w_qkv.T                 # (C, 3C)
    a_q_t, b_q_t = a_q.T, b_q.T       # (C, R), (R, C)
    a_v_t, b_v_t = a_v.T, b_v.T

    out = lora_qkv(x, w_qkv_t, b_qkv, a_q_t, b_q_t, a_v_t, b_v_t)
    out = jax.block_until_ready(out)

    ref = reference_lora_qkv(x, w_qkv_t, b_qkv, a_q_t, b_q_t, a_v_t, b_v_t)
    assert out.shape == (B, H, W, 3 * C), out.shape
    # bf16 MXU inputs (f32 accumulation, f32 LoRA-B path) vs pure-f32 ref.
    err = float(jnp.max(jnp.abs(out.astype(jnp.float32) - ref)))
    assert err < 3e-2, err

    print("KERNEL_OK")
</pallas_src>

<mosaic_0001>
module attributes {stable_mosaic.version = 11 : i64} {
  func.func @_lora_qkv_kernel(%arg0: i32, %arg1: memref<128x128xf32, #tpu.memory_space<vmem>>, %arg2: memref<128x384xbf16, #tpu.memory_space<vmem>>, %arg3: memref<1x384xf32, #tpu.memory_space<vmem>>, %arg4: memref<128x8xbf16, #tpu.memory_space<vmem>>, %arg5: memref<4x128xf32, #tpu.memory_space<vmem>>, %arg6: memref<4x128xf32, #tpu.memory_space<vmem>>, %arg7: memref<128x384xf32, #tpu.memory_space<vmem>>) attributes {dimension_semantics = [#tpu.dimension_semantics<parallel>], iteration_bounds = array<i64: 1>, scalar_prefetch = 0 : i64, scratch_operands = 0 : i64, tpu.core_type = #tpu.core_type<tc>, window_params = [{transform_indices = @transform_0, window_bounds = array<i64: 128, 128>}, {pipeline_mode = #tpu.pipeline_mode<synchronous>, transform_indices = @transform_1, window_bounds = array<i64: 128, 384>}, {pipeline_mode = #tpu.pipeline_mode<synchronous>, transform_indices = @transform_2, window_bounds = array<i64: 1, 384>}, {pipeline_mode = #tpu.pipeline_mode<synchronous>, transform_indices = @transform_3, window_bounds = array<i64: 128, 8>}, {pipeline_mode = #tpu.pipeline_mode<synchronous>, transform_indices = @transform_4, window_bounds = array<i64: 4, 128>}, {pipeline_mode = #tpu.pipeline_mode<synchronous>, transform_indices = @transform_5, window_bounds = array<i64: 4, 128>}, {transform_indices = @transform_6, window_bounds = array<i64: 128, 384>}]} {
    %c0 = arith.constant 0 : index
    %c0_0 = arith.constant 0 : index
    %0 = vector.load %arg1[%c0, %c0_0] : memref<128x128xf32, #tpu.memory_space<vmem>>, vector<128x128xf32>
    %1 = arith.truncf %0 : vector<128x128xf32> to vector<128x128xbf16>
    %c0_1 = arith.constant 0 : index
    %c0_2 = arith.constant 0 : index
    %2 = vector.load %arg4[%c0_1, %c0_2] : memref<128x8xbf16, #tpu.memory_space<vmem>>, vector<128x8xbf16>
    %cst = arith.constant dense<0.000000e+00> : vector<128x8xf32>
    %3 = tpu.matmul %1, %2, %cst {dimension_numbers = #tpu.dot_dimension_numbers<[1], [0], [0], [1], [0, 0, 1, 1], [], []>} : vector<128x128xbf16>, vector<128x8xbf16>, vector<128x8xf32> -> vector<128x8xf32>
    %c0_3 = arith.constant 0 : index
    %c0_4 = arith.constant 0 : index
    %4 = vector.load %arg5[%c0_3, %c0_4] : memref<4x128xf32, #tpu.memory_space<vmem>>, vector<4x128xf32>
    %c0_5 = arith.constant 0 : index
    %c0_6 = arith.constant 0 : index
    %5 = vector.load %arg6[%c0_5, %c0_6] : memref<4x128xf32, #tpu.memory_space<vmem>>, vector<4x128xf32>
    %6 = vector.extract_strided_slice %3 {offsets = [0, 0], sizes = [128, 1], strides = [1, 1]} : vector<128x8xf32> to vector<128x1xf32>
    %7 = vector.extract_strided_slice %4 {offsets = [0, 0], sizes = [1, 128], strides = [1, 1]} : vector<4x128xf32> to vector<1x128xf32>
    %8 = vector.broadcast %6 : vector<128x1xf32> to vector<128x128xf32>
    %9 = vector.broadcast %7 : vector<1x128xf32> to vector<128x128xf32>
    %10 = arith.mulf %8, %9 : vector<128x128xf32>
    %11 = vector.extract_strided_slice %3 {offsets = [0, 4], sizes = [128, 1], strides = [1, 1]} : vector<128x8xf32> to vector<128x1xf32>
    %12 = vector.extract_strided_slice %5 {offsets = [0, 0], sizes = [1, 128], strides = [1, 1]} : vector<4x128xf32> to vector<1x128xf32>
    %13 = vector.broadcast %11 : vector<128x1xf32> to vector<128x128xf32>
    %14 = vector.broadcast %12 : vector<1x128xf32> to vector<128x128xf32>
    %15 = arith.mulf %13, %14 : vector<128x128xf32>
    %16 = vector.extract_strided_slice %3 {offsets = [0, 1], sizes = [128, 1], strides = [1, 1]} : vector<128x8xf32> to vector<128x1xf32>
    %17 = vector.extract_strided_slice %4 {offsets = [1, 0], sizes = [1, 128], strides = [1, 1]} : vector<4x128xf32> to vector<1x128xf32>
    %18 = vector.broadcast %16 : vector<128x1xf32> to vector<128x128xf32>
    %19 = vector.broadcast %17 : vector<1x128xf32> to vector<128x128xf32>
    %20 = arith.mulf %18, %19 : vector<128x128xf32>
    %21 = arith.addf %10, %20 : vector<128x128xf32>
    %22 = vector.extract_strided_slice %3 {offsets = [0, 5], sizes = [128, 1], strides = [1, 1]} : vector<128x8xf32> to vector<128x1xf32>
    %23 = vector.extract_strided_slice %5 {offsets = [1, 0], sizes = [1, 128], strides = [1, 1]} : vector<4x128xf32> to vector<1x128xf32>
    %24 = vector.broadcast %22 : vector<128x1xf32> to vector<128x128xf32>
    %25 = vector.broadcast %23 : vector<1x128xf32> to vector<128x128xf32>
    %26 = arith.mulf %24, %25 : vector<128x128xf32>
    %27 = arith.addf %15, %26 : vector<128x128xf32>
    %28 = vector.extract_strided_slice %3 {offsets = [0, 2], sizes = [128, 1], strides = [1, 1]} : vector<128x8xf32> to vector<128x1xf32>
    %29 = vector.extract_strided_slice %4 {offsets = [2, 0], sizes = [1, 128], strides = [1, 1]} : vector<4x128xf32> to vector<1x128xf32>
    %30 = vector.broadcast %28 : vector<128x1xf32> to vector<128x128xf32>
    %31 = vector.broadcast %29 : vector<1x128xf32> to vector<128x128xf32>
    %32 = arith.mulf %30, %31 : vector<128x128xf32>
    %33 = arith.addf %21, %32 : vector<128x128xf32>
    %34 = vector.extract_strided_slice %3 {offsets = [0, 6], sizes = [128, 1], strides = [1, 1]} : vector<128x8xf32> to vector<128x1xf32>
    %35 = vector.extract_strided_slice %5 {offsets = [2, 0], sizes = [1, 128], strides = [1, 1]} : vector<4x128xf32> to vector<1x128xf32>
    %36 = vector.broadcast %34 : vector<128x1xf32> to vector<128x128xf32>
    %37 = vector.broadcast %35 : vector<1x128xf32> to vector<128x128xf32>
    %38 = arith.mulf %36, %37 : vector<128x128xf32>
    %39 = arith.addf %27, %38 : vector<128x128xf32>
    %40 = vector.extract_strided_slice %3 {offsets = [0, 3], sizes = [128, 1], strides = [1, 1]} : vector<128x8xf32> to vector<128x1xf32>
    %41 = vector.extract_strided_slice %4 {offsets = [3, 0], sizes = [1, 128], strides = [1, 1]} : vector<4x128xf32> to vector<1x128xf32>
    %42 = vector.broadcast %40 : vector<128x1xf32> to vector<128x128xf32>
    %43 = vector.broadcast %41 : vector<1x128xf32> to vector<128x128xf32>
    %44 = arith.mulf %42, %43 : vector<128x128xf32>
    %45 = arith.addf %33, %44 : vector<128x128xf32>
    %46 = vector.extract_strided_slice %3 {offsets = [0, 7], sizes = [128, 1], strides = [1, 1]} : vector<128x8xf32> to vector<128x1xf32>
    %47 = vector.extract_strided_slice %5 {offsets = [3, 0], sizes = [1, 128], strides = [1, 1]} : vector<4x128xf32> to vector<1x128xf32>
    %48 = vector.broadcast %46 : vector<128x1xf32> to vector<128x128xf32>
    %49 = vector.broadcast %47 : vector<1x128xf32> to vector<128x128xf32>
    %50 = arith.mulf %48, %49 : vector<128x128xf32>
    %51 = arith.addf %39, %50 : vector<128x128xf32>
    %c0_7 = arith.constant 0 : index
    %c0_8 = arith.constant 0 : index
    %52 = vector.load %arg2[%c0_7, %c0_8] : memref<128x384xbf16, #tpu.memory_space<vmem>>, vector<128x128xbf16>
    %cst_9 = arith.constant dense<0.000000e+00> : vector<128x128xf32>
    %53 = tpu.matmul %1, %52, %cst_9 {dimension_numbers = #tpu.dot_dimension_numbers<[1], [0], [0], [1], [0, 0, 1, 1], [], []>} : vector<128x128xbf16>, vector<128x128xbf16>, vector<128x128xf32> -> vector<128x128xf32>
    %c0_10 = arith.constant 0 : index
    %c0_11 = arith.constant 0 : index
    %54 = vector.load %arg3[%c0_10, %c0_11] : memref<1x384xf32, #tpu.memory_space<vmem>>, vector<1x128xf32>
    %55 = vector.broadcast %54 : vector<1x128xf32> to vector<128x128xf32>
    %56 = arith.addf %53, %55 : vector<128x128xf32>
    %57 = arith.addf %56, %45 : vector<128x128xf32>
    %c0_12 = arith.constant 0 : index
    %c0_13 = arith.constant 0 : index
    %58 = vector.load %arg7[%c0_12, %c0_13] : memref<128x384xf32, #tpu.memory_space<vmem>>, vector<128x128xf32>
    tpu.vector_store %arg7[%c0_12, %c0_13], %57 {strides = array<i32>} : memref<128x384xf32, #tpu.memory_space<vmem>>, vector<128x128xf32>,
    %c0_14 = arith.constant 0 : index
    %c128 = arith.constant 128 : index
    %59 = vector.load %arg2[%c0_14, %c128] : memref<128x384xbf16, #tpu.memory_space<vmem>>, vector<128x128xbf16>
    %cst_15 = arith.constant dense<0.000000e+00> : vector<128x128xf32>
    %60 = tpu.matmul %1, %59, %cst_15 {dimension_numbers = #tpu.dot_dimension_numbers<[1], [0], [0], [1], [0, 0, 1, 1], [], []>} : vector<128x128xbf16>, vector<128x128xbf16>, vector<128x128xf32> -> vector<128x128xf32>
    %c0_16 = arith.constant 0 : index
    %c128_17 = arith.constant 128 : index
    %61 = vector.load %arg3[%c0_16, %c128_17] : memref<1x384xf32, #tpu.memory_space<vmem>>, vector<1x128xf32>
    %62 = vector.broadcast %61 : vector<1x128xf32> to vector<128x128xf32>
    %63 = arith.addf %60, %62 : vector<128x128xf32>
    %c0_18 = arith.constant 0 : index
    %c128_19 = arith.constant 128 : index
    %64 = vector.load %arg7[%c0_18, %c128_19] : memref<128x384xf32, #tpu.memory_space<vmem>>, vector<128x128xf32>
    tpu.vector_store %arg7[%c0_18, %c128_19], %63 {strides = array<i32>} : memref<128x384xf32, #tpu.memory_space<vmem>>, vector<128x128xf32>,
    %c0_20 = arith.constant 0 : index
    %c256 = arith.constant 256 : index
    %65 = vector.load %arg2[%c0_20, %c256] : memref<128x384xbf16, #tpu.memory_space<vmem>>, vector<128x128xbf16>
    %cst_21 = arith.constant dense<0.000000e+00> : vector<128x128xf32>
    %66 = tpu.matmul %1, %65, %cst_21 {dimension_numbers = #tpu.dot_dimension_numbers<[1], [0], [0], [1], [0, 0, 1, 1], [], []>} : vector<128x128xbf16>, vector<128x128xbf16>, vector<128x128xf32> -> vector<128x128xf32>
    %c0_22 = arith.constant 0 : index
    %c256_23 = arith.constant 256 : index
    %67 = vector.load %arg3[%c0_22, %c256_23] : memref<1x384xf32, #tpu.memory_space<vmem>>, vector<1x128xf32>
    %68 = vector.broadcast %67 : vector<1x128xf32> to vector<128x128xf32>
    %69 = arith.addf %66, %68 : vector<128x128xf32>
    %70 = arith.addf %69, %51 : vector<128x128xf32>
    %c0_24 = arith.constant 0 : index
    %c256_25 = arith.constant 256 : index
    %71 = vector.load %arg7[%c0_24, %c256_25] : memref<128x384xf32, #tpu.memory_space<vmem>>, vector<128x128xf32>
    tpu.vector_store %arg7[%c0_24, %c256_25], %70 {strides = array<i32>} : memref<128x384xf32, #tpu.memory_space<vmem>>, vector<128x128xf32>,
    return
  }
  func.func @transform_0(%arg0: i32) -> (i32, i32) {
    %c0_i32 = arith.constant 0 : i32
    %c0_i32_0 = arith.constant 0 : i32
    return %arg0, %c0_i32 : i32, i32
  }
  func.func @transform_1(%arg0: i32) -> (i32, i32) {
    %c0_i32 = arith.constant 0 : i32
    %c0_i32_0 = arith.constant 0 : i32
    %c0_i32_1 = arith.constant 0 : i32
    return %c0_i32, %c0_i32_0 : i32, i32
  }
  func.func @transform_2(%arg0: i32) -> (i32, i32) {
    %c0_i32 = arith.constant 0 : i32
    %c0_i32_0 = arith.constant 0 : i32
    %c0_i32_1 = arith.constant 0 : i32
    return %c0_i32, %c0_i32_0 : i32, i32
  }
  func.func @transform_3(%arg0: i32) -> (i32, i32) {
    %c0_i32 = arith.constant 0 : i32
    %c0_i32_0 = arith.constant 0 : i32
    %c0_i32_1 = arith.constant 0 : i32
    return %c0_i32, %c0_i32_0 : i32, i32
  }
  func.func @transform_4(%arg0: i32) -> (i32, i32) {
    %c0_i32 = arith.constant 0 : i32
    %c0_i32_0 = arith.constant 0 : i32
    %c0_i32_1 = arith.constant 0 : i32
    return %c0_i32, %c0_i32_0 : i32, i32
  }
  func.func @transform_5(%arg0: i32) -> (i32, i32) {
    %c0_i32 = arith.constant 0 : i32
    %c0_i32_0 = arith.constant 0 : i32
    %c0_i32_1 = arith.constant 0 : i32
    return %c0_i32, %c0_i32_0 : i32, i32
  }
  func.func @transform_6(%arg0: i32) -> (i32, i32) {
    %c0_i32 = arith.constant 0 : i32
    %c0_i32_0 = arith.constant 0 : i32
    return %arg0, %c0_i32 : i32, i32
  }
}

</mosaic_0001>

<llo_original>
// kernel: tpu_custom_call.1
$region0: #{tpu_custom_call.1}
  #allocation0 [shape = 'u32[]', space=smem, size = 0x4, offset = 0x4, fixed_abs, tag = 'smem constant byte address 0x4 - core index']
  #allocation1 [shape = 'u32[144,128]{1,0:T(1,128)}', space=vmem, size = 0x12000, scoped, tag = 'internal scratch']
  %s0 = inlined_call_operand.hbm [shape: f32[128,128], index: 0, kind: input, shape index: {}]
  %s1 = inlined_call_operand.hbm [shape: bf16[128,384], index: 1, kind: input, shape index: {}]
  %s2 = inlined_call_operand.vmem [shape: f32[1,384], index: 2, kind: input, shape index: {}]
  %s3 = inlined_call_operand.vmem [shape: bf16[128,8], index: 3, kind: input, shape index: {}]
  %s4 = inlined_call_operand.vmem [shape: f32[4,128], index: 4, kind: input, shape index: {}]
  %s5 = inlined_call_operand.vmem [shape: f32[4,128], index: 5, kind: input, shape index: {}]
  %s6 = inlined_call_operand.hbm [shape: f32[128,384], index: 6, kind: output, shape index: {}]
  %s7 = sld [smem:[#allocation0]]
  $region42: #{tpu_custom_call.1} parent=0
    _
  %s9 = ssub.s32 1, %s7
  %s10 = scalar_select 0, %s9, %s7
  $region1: #{tpu_custom_call.1} parent=0
    #allocation2 [shape = 'u8[65536]{0}', space=vmem, size = 0x10000, scoped, tag = 'input window, operand 0, single buffered']
    #allocation3 [shape = 's32[1]{0}', space=sflag, size = 0x4, scoped, tag = 'scoped memory for tpu_custom_call.1']
    #allocation4 [shape = 's32[1]{0}', space=sflag, size = 0x4, scoped, tag = 'scoped memory for tpu_custom_call.1']
    #allocation5 [shape = 'u8[98304]{0}', space=vmem, size = 0x18000, scoped, tag = 'input window, operand 1, single buffered']
    #allocation6 [shape = 's32[1]{0}', space=sflag, size = 0x4, scoped, tag = 'scoped memory for tpu_custom_call.1']
    #allocation7 [shape = 'u8[196608]{0}', space=vmem, size = 0x30000, scoped, tag = 'output window, operand 0, single buffered']
    %11 = vsyncpa [#allocation3], 0
    %12 = vsyncpa [#allocation6], 0
    %13 = vsyncpa [#allocation4], 0
    // Predicated region
    $region2: #{tpu_custom_call.1} parent=1 // pred_check
      _
    $region3: #{tpu_custom_call.1} parent=1 // pred_check_branch
      %15 = sbr.rel (0) target = $region5
    $region4: #{tpu_custom_call.1} parent=1 // pred_region
      %s17 = ssub.s32 2048, 2048
      %18 = vsyncadd [#allocation3], %s17
      %s19 = sshll.u32 [#allocation2], 4
      %s20 = int_to_ptr.vmem [resolvable:$true] %s19
      %25 = dma.hbm_to_vmem [thread:$0]  %s0, 2048, %s20, [#allocation3], 128, 128, 8
    $region5: #{tpu_custom_call.1} parent=1 // pred_fallthru
      _
    // Predicated region
    $region6: #{tpu_custom_call.1} parent=1 // pred_check
      _
    $region7: #{tpu_custom_call.1} parent=1 // pred_check_branch
      %27 = sbr.rel (0) target = $region9
    $region8: #{tpu_custom_call.1} parent=1 // pred_region
      %s29 = ssub.s32 3072, 3072
      %30 = vsyncadd [#allocation6], %s29
      %s31 = sshll.u32 [#allocation5], 4
      %s32 = int_to_ptr.vmem [resolvable:$true] %s31
      %37 = dma.hbm_to_vmem [thread:$0]  %s1, 3072, %s32, [#allocation6], 192, 192, 12
    $region9: #{tpu_custom_call.1} parent=1 // pred_fallthru
      _
    // Predicated region
    $region10: #{tpu_custom_call.1} parent=1 // pred_check
      _
    $region11: #{tpu_custom_call.1} parent=1 // pred_check_branch
      %39 = sbr.rel (0) target = $region13
    $region12: #{tpu_custom_call.1} parent=1 // pred_region
      _
    $region13: #{tpu_custom_call.1} parent=1 // pred_fallthru
      _
    // Predicated region
    $region14: #{tpu_custom_call.1} parent=1 // pred_check
      _
    $region15: #{tpu_custom_call.1} parent=1 // pred_check_branch
      %41 = sbr.rel (0) target = $region17
    $region16: #{tpu_custom_call.1} parent=1 // pred_region
      _
    $region17: #{tpu_custom_call.1} parent=1 // pred_fallthru
      _
    // Predicated region
    $region18: #{tpu_custom_call.1} parent=1 // pred_check
      _
    $region19: #{tpu_custom_call.1} parent=1 // pred_check_branch
      %43 = sbr.rel (0) target = $region21
    $region20: #{tpu_custom_call.1} parent=1 // pred_region
      _
    $region21: #{tpu_custom_call.1} parent=1 // pred_fallthru
      _
    // Predicated region
    $region22: #{tpu_custom_call.1} parent=1 // pred_check
      _
    $region23: #{tpu_custom_call.1} parent=1 // pred_check_branch
      %45 = sbr.rel (0) target = $region25
    $region24: #{tpu_custom_call.1} parent=1 // pred_region
      _
    $region25: #{tpu_custom_call.1} parent=1 // pred_fallthru
      _
    // Predicated region
    $region26: #{tpu_custom_call.1} parent=1 // pred_check
      _
    $region27: #{tpu_custom_call.1} parent=1 // pred_check_branch
      %47 = sbr.rel (0) target = $region29
    $region28: #{tpu_custom_call.1} parent=1 // pred_region
      %48 = dma.done [#allocation3], 2048
    $region29: #{tpu_custom_call.1} parent=1 // pred_fallthru
      _
    // Predicated region
    $region30: #{tpu_custom_call.1} parent=1 // pred_check
      _
    $region31: #{tpu_custom_call.1} parent=1 // pred_check_branch
      %50 = sbr.rel (0) target = $region33
    $region32: #{tpu_custom_call.1} parent=1 // pred_region
      %51 = dma.done [#allocation6], 3072
    $region33: #{tpu_custom_call.1} parent=1 // pred_fallthru
      _
    %v53 = vld [vmem:[#allocation2] sm:$0xff]
    %v54 = vld [vmem:[#allocation2 + $0x8] sm:$0xff]
    %v55 = vld [vmem:[#allocation2 + $0x10] sm:$0xff]
    %v56 = vld [vmem:[#allocation2 + $0x18] sm:$0xff]
    %v57 = vld [vmem:[#allocation2 + $0x20] sm:$0xff]
    %v58 = vld [vmem:[#allocation2 + $0x28] sm:$0xff]
    %v59 = vld [vmem:[#allocation2 + $0x30] sm:$0xff]
    %v60 = vld [vmem:[#allocation2 + $0x38] sm:$0xff]
    %v61 = vld [vmem:[#allocation2 + $0x40] sm:$0xff]
    %v62 = vld [vmem:[#allocation2 + $0x48] sm:$0xff]
    %v63 = vld [vmem:[#allocation2 + $0x50] sm:$0xff]
    %v64 = vld [vmem:[#allocation2 + $0x58] sm:$0xff]
    %v65 = vld [vmem:[#allocation2 + $0x60] sm:$0xff]
    %v66 = vld [vmem:[#allocation2 + $0x68] sm:$0xff]
    %v67 = vld [vmem:[#allocation2 + $0x70] sm:$0xff]
    %v68 = vld [vmem:[#allocation2 + $0x78] sm:$0xff]
    %v69 = vpack.c.bf16 %v54, %v53
    %v70 = vpack.c.bf16 %v56, %v55
    %v71 = vpack.c.bf16 %v58, %v57
    %v72 = vpack.c.bf16 %v60, %v59
    %v73 = vpack.c.bf16 %v62, %v61
    %v74 = vpack.c.bf16 %v64, %v63
    %v75 = vpack.c.bf16 %v66, %v65
    %v76 = vpack.c.bf16 %v68, %v67
    %v77 = vld [vmem:[%s3] sm:$0xf]
    %v78 = vld [vmem:[%s3 + $0x4] sm:$0xf]
    %v79 = vld [vmem:[%s3 + $0x8] sm:$0xf]
    %v80 = vld [vmem:[%s3 + $0xc] sm:$0xf]
    %v81 = vld [vmem:[%s3 + $0x10] sm:$0xf]
    %v82 = vld [vmem:[%s3 + $0x14] sm:$0xf]
    %v83 = vld [vmem:[%s3 + $0x18] sm:$0xf]
    %v84 = vld [vmem:[%s3 + $0x1c] sm:$0xf]
    %v85 = vld [vmem:[%s3 + $0x20] sm:$0xf]
    %v86 = vld [vmem:[%s3 + $0x24] sm:$0xf]
    %v87 = vld [vmem:[%s3 + $0x28] sm:$0xf]
    %v88 = vld [vmem:[%s3 + $0x2c] sm:$0xf]
    %v89 = vld [vmem:[%s3 + $0x30] sm:$0xf]
    %v90 = vld [vmem:[%s3 + $0x34] sm:$0xf]
    %v91 = vld [vmem:[%s3 + $0x38] sm:$0xf]
    %v92 = vld [vmem:[%s3 + $0x3c] sm:$0xf]
    %v109 = vunpack.c.l.b16 %v77
    %v110 = vunpack.c.l.b16 %v78
    %v111 = vunpack.c.l.b16 %v79
    %v112 = vunpack.c.l.b16 %v80
    %v113 = vunpack.c.l.b16 %v81
    %v114 = vunpack.c.l.b16 %v82
    %v115 = vunpack.c.l.b16 %v83
    %v116 = vunpack.c.l.b16 %v84
    %v117 = vunpack.c.l.b16 %v85
    %v118 = vunpack.c.l.b16 %v86
    %v119 = vunpack.c.l.b16 %v87
    %v120 = vunpack.c.l.b16 %v88
    %v121 = vunpack.c.l.b16 %v89
    %v122 = vunpack.c.l.b16 %v90
    %v123 = vunpack.c.l.b16 %v91
    %v124 = vunpack.c.l.b16 %v92
    %v125 = vpack.c.b16 %v110, %v109
    %v126 = vpack.c.b16 %v112, %v111
    %v127 = vpack.c.b16 %v114, %v113
    %v128 = vpack.c.b16 %v116, %v115
    %v129 = vpack.c.b16 %v118, %v117
    %v130 = vpack.c.b16 %v120, %v119
    %v131 = vpack.c.b16 %v122, %v121
    %v132 = vpack.c.b16 %v124, %v123
    %141 = vmatprep.subr.bf16.mxu0 0
    %142 = vmatpush1.bf16.msra.mxu0 %v125
    %143 = vmatprep.subr.bf16.mxu0 0
    %144 = vmatpush1.bf16.msra.mxu0 %v126
    %145 = vmatprep.subr.bf16.mxu0 0
    %146 = vmatpush1.bf16.msra.mxu0 %v127
    %147 = vmatprep.subr.bf16.mxu0 0
    %148 = vmatpush1.bf16.msra.mxu0 %v128
    %149 = vmatprep.subr.bf16.mxu0 0
    %150 = vmatpush1.bf16.msra.mxu0 %v129
    %151 = vmatprep.subr.bf16.mxu0 0
    %152 = vmatpush1.bf16.msra.mxu0 %v130
    %153 = vmatprep.subr.bf16.mxu0 0
    %154 = vmatpush1.bf16.msra.mxu0 %v131
    %155 = vmatprep.subr.bf16.mxu0 0
    %156 = vmatpush1.bf16.msra.mxu0 %v132
    %157 = vmatprep.subr.bf16.mxu0 0
    %158 = vmatpush1.bf16.msra.mxu0 0
    %159 = vmatprep.subr.bf16.mxu0 0
    %160 = vmatpush1.bf16.msra.mxu0 0
    %161 = vmatprep.subr.bf16.mxu0 0
    %162 = vmatpush1.bf16.msra.mxu0 0
    %163 = vmatprep.subr.bf16.mxu0 0
    %164 = vmatpush1.bf16.msra.mxu0 0
    %165 = vmatprep.subr.bf16.mxu0 0
    %166 = vmatpush1.bf16.msra.mxu0 0
    %167 = vmatprep.subr.bf16.mxu0 0
    %168 = vmatpush1.bf16.msra.mxu0 0
    %169 = vmatprep.subr.bf16.mxu0 0
    %170 = vmatpush1.bf16.msra.mxu0 0
    %171 = vmatprep.subr.bf16.mxu0 0
    %172 = vmatpush1.bf16.msra.mxu0 0
    %173 = vmatprep.mubr.bf16.mxu0 0
    %174 = vmatmul.mubr.bf16.gmra.mrb[0].mxu0 %v69
    %v175 = vpop.f32.mrb[0].mxu0
    %v176 = vadd.f32 0.0, %v175
    %v177 = vpop.f32.mrb[0].mxu0
    %v178 = vpop.f32.mrb[0].mxu0
    %v179 = vadd.f32 0.0, %v178
    %v180 = vpop.f32.mrb[0].mxu0
    %181 = vmatprep.mubr.bf16.mxu0 0
    %182 = vmatmul.mubr.bf16.gmra.mrb[0].mxu0 %v70
    %v183 = vpop.f32.mrb[0].mxu0
    %v184 = vadd.f32 0.0, %v183
    %v185 = vpop.f32.mrb[0].mxu0
    %v186 = vpop.f32.mrb[0].mxu0
    %v187 = vadd.f32 0.0, %v186
    %v188 = vpop.f32.mrb[0].mxu0
    %189 = vmatprep.mubr.bf16.mxu0 0
    %190 = vmatmul.mubr.bf16.gmra.mrb[0].mxu0 %v71
    %v191 = vpop.f32.mrb[0].mxu0
    %v192 = vadd.f32 0.0, %v191
    %v193 = vpop.f32.mrb[0].mxu0
    %v194 = vpop.f32.mrb[0].mxu0
    %v195 = vadd.f32 0.0, %v194
    %v196 = vpop.f32.mrb[0].mxu0
    %197 = vmatprep.mubr.bf16.mxu0 0
    %198 = vmatmul.mubr.bf16.gmra.mrb[0].mxu0 %v72
    %v199 = vpop.f32.mrb[0].mxu0
    %v200 = vadd.f32 0.0, %v199
    %v201 = vpop.f32.mrb[0].mxu0
    %v202 = vpop.f32.mrb[0].mxu0
    %v203 = vadd.f32 0.0, %v202
    %v204 = vpop.f32.mrb[0].mxu0
    %205 = vmatprep.mubr.bf16.mxu0 0
    %206 = vmatmul.mubr.bf16.gmra.mrb[0].mxu0 %v73
    %v207 = vpop.f32.mrb[0].mxu0
    %v208 = vadd.f32 0.0, %v207
    %v209 = vpop.f32.mrb[0].mxu0
    %v210 = vpop.f32.mrb[0].mxu0
    %v211 = vadd.f32 0.0, %v210
    %v212 = vpop.f32.mrb[0].mxu0
    %213 = vmatprep.mubr.bf16.mxu0 0
    %214 = vmatmul.mubr.bf16.gmra.mrb[0].mxu0 %v74
    %v215 = vpop.f32.mrb[0].mxu0
    %v216 = vadd.f32 0.0, %v215
    %v217 = vpop.f32.mrb[0].mxu0
    %v218 = vpop.f32.mrb[0].mxu0
    %v219 = vadd.f32 0.0, %v218
    %v220 = vpop.f32.mrb[0].mxu0
    %221 = vmatprep.mubr.bf16.mxu0 0
    %222 = vmatmul.mubr.bf16.gmra.mrb[0].mxu0 %v75
    %v223 = vpop.f32.mrb[0].mxu0
    %v224 = vadd.f32 0.0, %v223
    %v225 = vpop.f32.mrb[0].mxu0
    %v226 = vpop.f32.mrb[0].mxu0
    %v227 = vadd.f32 0.0, %v226
    %v228 = vpop.f32.mrb[0].mxu0
    %229 = vmatprep.mubr.bf16.mxu0 0
    %230 = vmatmul.mubr.bf16.gmra.mrb[0].mxu0 %v76
    %v231 = vpop.f32.mrb[0].mxu0
    %v232 = vadd.f32 0.0, %v231
    %v233 = vpop.f32.mrb[0].mxu0
    %v234 = vpop.f32.mrb[0].mxu0
    %v235 = vadd.f32 0.0, %v234
    %v236 = vpop.f32.mrb[0].mxu0
    %237 = vdwg.mxu0
    %v238 = vld [vmem:[%s4] sm:$0xf]
    %v239 = vld [vmem:[%s5] sm:$0xf]
    %241 = vset.pattern.permute.xlu0 0
    %242 = vperm.xlu0 %241, %v176
    %v243 = vpop.permute.xlu0 %242
    %246 = vset.pattern.permute.xlu0 0
    %247 = vperm.xlu0 %246, %v179
    %v248 = vpop.permute.xlu0 %247
    %251 = vset.pattern.permute.xlu0 0
    %252 = vperm.xlu0 %251, %v184
    %v253 = vpop.permute.xlu0 %252
    %256 = vset.pattern.permute.xlu0 0
    %257 = vperm.xlu0 %256, %v187
    %v258 = vpop.permute.xlu0 %257
    %261 = vset.pattern.permute.xlu0 0
    %262 = vperm.xlu0 %261, %v192
    %v263 = vpop.permute.xlu0 %262
    %266 = vset.pattern.permute.xlu0 0
    %267 = vperm.xlu0 %266, %v195
    %v268 = vpop.permute.xlu0 %267
    %271 = vset.pattern.permute.xlu0 0
    %272 = vperm.xlu0 %271, %v200
    %v273 = vpop.permute.xlu0 %272
    %276 = vset.pattern.permute.xlu0 0
    %277 = vperm.xlu0 %276, %v203
    %v278 = vpop.permute.xlu0 %277
    %281 = vset.pattern.permute.xlu0 0
    %282 = vperm.xlu0 %281, %v208
    %v283 = vpop.permute.xlu0 %282
    %286 = vset.pattern.permute.xlu0 0
    %287 = vperm.xlu0 %286, %v211
    %v288 = vpop.permute.xlu0 %287
    %291 = vset.pattern.permute.xlu0 0
    %292 = vperm.xlu0 %291, %v216
    %v293 = vpop.permute.xlu0 %292
    %296 = vset.pattern.permute.xlu0 0
    %297 = vperm.xlu0 %296, %v219
    %v298 = vpop.permute.xlu0 %297
    %301 = vset.pattern.permute.xlu0 0
    %302 = vperm.xlu0 %301, %v224
    %v303 = vpop.permute.xlu0 %302
    %306 = vset.pattern.permute.xlu0 0
    %307 = vperm.xlu0 %306, %v227
    %v308 = vpop.permute.xlu0 %307
    %311 = vset.pattern.permute.xlu0 0
    %312 = vperm.xlu0 %311, %v232
    %v313 = vpop.permute.xlu0 %312
    %316 = vset.pattern.permute.xlu0 0
    %317 = vperm.xlu0 %316, %v235
    %v318 = vpop.permute.xlu0 %317
    %v320 = vlaneseq
    %v321 = vshrl.u32 %v320, 7
    %v322 = vsub.s32 0, %v321
    %v323 = vrot.slane %v238, %v322
    %v324 = vmul.f32 %v243, %v323
    %v325 = vmul.f32 %v248, %v323
    %v326 = vmul.f32 %v253, %v323
    %v327 = vmul.f32 %v258, %v323
    %v328 = vmul.f32 %v263, %v323
    %v329 = vmul.f32 %v268, %v323
    %v330 = vmul.f32 %v273, %v323
    %v331 = vmul.f32 %v278, %v323
    %v332 = vmul.f32 %v283, %v323
    %v333 = vmul.f32 %v288, %v323
    %v334 = vmul.f32 %v293, %v323
    %v335 = vmul.f32 %v298, %v323
    %v336 = vmul.f32 %v303, %v323
    %v337 = vmul.f32 %v308, %v323
    %v338 = vmul.f32 %v313, %v323
    %v339 = vmul.f32 %v318, %v323
    %340 = vset.pattern.permute.xlu0 4
    %341 = vperm.xlu0 %340, %v176
    %v342 = vpop.permute.xlu0 %341
    %344 = vset.pattern.permute.xlu0 4
    %345 = vperm.xlu0 %344, %v179
    %v346 = vpop.permute.xlu0 %345
    %348 = vset.pattern.permute.xlu0 4
    %349 = vperm.xlu0 %348, %v184
    %v350 = vpop.permute.xlu0 %349
    %352 = vset.pattern.permute.xlu0 4
    %353 = vperm.xlu0 %352, %v187
    %v354 = vpop.permute.xlu0 %353
    %356 = vset.pattern.permute.xlu0 4
    %357 = vperm.xlu0 %356, %v192
    %v358 = vpop.permute.xlu0 %357
    %360 = vset.pattern.permute.xlu0 4
    %361 = vperm.xlu0 %360, %v195
    %v362 = vpop.permute.xlu0 %361
    %364 = vset.pattern.permute.xlu0 4
    %365 = vperm.xlu0 %364, %v200
    %v366 = vpop.permute.xlu0 %365
    %368 = vset.pattern.permute.xlu0 4
    %369 = vperm.xlu0 %368, %v203
    %v370 = vpop.permute.xlu0 %369
    %372 = vset.pattern.permute.xlu0 4
    %373 = vperm.xlu0 %372, %v208
    %v374 = vpop.permute.xlu0 %373
    %376 = vset.pattern.permute.xlu0 4
    %377 = vperm.xlu0 %376, %v211
    %v378 = vpop.permute.xlu0 %377
    %380 = vset.pattern.permute.xlu0 4
    %381 = vperm.xlu0 %380, %v216
    %v382 = vpop.permute.xlu0 %381
    %384 = vset.pattern.permute.xlu0 4
    %385 = vperm.xlu0 %384, %v219
    %v386 = vpop.permute.xlu0 %385
    %388 = vset.pattern.permute.xlu0 4
    %389 = vperm.xlu0 %388, %v224
    %v390 = vpop.permute.xlu0 %389
    %392 = vset.pattern.permute.xlu0 4
    %393 = vperm.xlu0 %392, %v227
    %v394 = vpop.permute.xlu0 %393
    %396 = vset.pattern.permute.xlu0 4
    %397 = vperm.xlu0 %396, %v232
    %v398 = vpop.permute.xlu0 %397
    %400 = vset.pattern.permute.xlu0 4
    %401 = vperm.xlu0 %400, %v235
    %v402 = vpop.permute.xlu0 %401
    %v404 = vlaneseq
    %v405 = vshrl.u32 %v404, 7
    %v406 = vsub.s32 0, %v405
    %v407 = vrot.slane %v239, %v406
    %v408 = vmul.f32 %v342, %v407
    %v409 = vmul.f32 %v346, %v407
    %v410 = vmul.f32 %v350, %v407
    %v411 = vmul.f32 %v354, %v407
    %v412 = vmul.f32 %v358, %v407
    %v413 = vmul.f32 %v362, %v407
    %v414 = vmul.f32 %v366, %v407
    %v415 = vmul.f32 %v370, %v407
    %v416 = vmul.f32 %v374, %v407
    %v417 = vmul.f32 %v378, %v407
    %v418 = vmul.f32 %v382, %v407
    %v419 = vmul.f32 %v386, %v407
    %v420 = vmul.f32 %v390, %v407
    %v421 = vmul.f32 %v394, %v407
    %v422 = vmul.f32 %v398, %v407
    %v423 = vmul.f32 %v402, %v407
    %424 = vset.pattern.permute.xlu0 1
    %425 = vperm.xlu0 %424, %v176
    %v426 = vpop.permute.xlu0 %425
    %428 = vset.pattern.permute.xlu0 1
    %429 = vperm.xlu0 %428, %v179
    %v430 = vpop.permute.xlu0 %429
    %432 = vset.pattern.permute.xlu0 1
    %433 = vperm.xlu0 %432, %v184
    %v434 = vpop.permute.xlu0 %433
    %436 = vset.pattern.permute.xlu0 1
    %437 = vperm.xlu0 %436, %v187
    %v438 = vpop.permute.xlu0 %437
    %440 = vset.pattern.permute.xlu0 1
    %441 = vperm.xlu0 %440, %v192
    %v442 = vpop.permute.xlu0 %441
    %444 = vset.pattern.permute.xlu0 1
    %445 = vperm.xlu0 %444, %v195
    %v446 = vpop.permute.xlu0 %445
    %448 = vset.pattern.permute.xlu0 1
    %449 = vperm.xlu0 %448, %v200
    %v450 = vpop.permute.xlu0 %449
    %452 = vset.pattern.permute.xlu0 1
    %453 = vperm.xlu0 %452, %v203
    %v454 = vpop.permute.xlu0 %453
    %456 = vset.pattern.permute.xlu0 1
    %457 = vperm.xlu0 %456, %v208
    %v458 = vpop.permute.xlu0 %457
    %460 = vset.pattern.permute.xlu0 1
    %461 = vperm.xlu0 %460, %v211
    %v462 = vpop.permute.xlu0 %461
    %464 = vset.pattern.permute.xlu0 1
    %465 = vperm.xlu0 %464, %v216
    %v466 = vpop.permute.xlu0 %465
    %468 = vset.pattern.permute.xlu0 1
    %469 = vperm.xlu0 %468, %v219
    %v470 = vpop.permute.xlu0 %469
    %472 = vset.pattern.permute.xlu0 1
    %473 = vperm.xlu0 %472, %v224
    %v474 = vpop.permute.xlu0 %473
    %476 = vset.pattern.permute.xlu0 1
    %477 = vperm.xlu0 %476, %v227
    %v478 = vpop.permute.xlu0 %477
    %480 = vset.pattern.permute.xlu0 1
    %481 = vperm.xlu0 %480, %v232
    %v482 = vpop.permute.xlu0 %481
    %484 = vset.pattern.permute.xlu0 1
    %485 = vperm.xlu0 %484, %v235
    %v486 = vpop.permute.xlu0 %485
    %v488 = vlaneseq
    %v489 = vshrl.u32 %v488, 7
    %v490 = vsub.s32 1, %v489
    %v491 = vrot.slane %v238, %v490
    %v492 = vmul.f32 %v426, %v491
    %v493 = vmul.f32 %v430, %v491
    %v494 = vmul.f32 %v434, %v491
    %v495 = vmul.f32 %v438, %v491
    %v496 = vmul.f32 %v442, %v491
    %v497 = vmul.f32 %v446, %v491
    %v498 = vmul.f32 %v450, %v491
    %v499 = vmul.f32 %v454, %v491
    %v500 = vmul.f32 %v458, %v491
    %v501 = vmul.f32 %v462, %v491
    %v502 = vmul.f32 %v466, %v491
    %v503 = vmul.f32 %v470, %v491
    %v504 = vmul.f32 %v474, %v491
    %v505 = vmul.f32 %v478, %v491
    %v506 = vmul.f32 %v482, %v491
    %v507 = vmul.f32 %v486, %v491
    %v508 = vadd.f32 %v324, %v492
    %v509 = vadd.f32 %v325, %v493
    %v510 = vadd.f32 %v326, %v494
    %v511 = vadd.f32 %v327, %v495
    %v512 = vadd.f32 %v328, %v496
    %v513 = vadd.f32 %v329, %v497
    %v514 = vadd.f32 %v330, %v498
    %v515 = vadd.f32 %v331, %v499
    %v516 = vadd.f32 %v332, %v500
    %v517 = vadd.f32 %v333, %v501
    %v518 = vadd.f32 %v334, %v502
    %v519 = vadd.f32 %v335, %v503
    %v520 = vadd.f32 %v336, %v504
    %v521 = vadd.f32 %v337, %v505
    %v522 = vadd.f32 %v338, %v506
    %v523 = vadd.f32 %v339, %v507
    %524 = vset.pattern.permute.xlu0 5
    %525 = vperm.xlu0 %524, %v176
    %v526 = vpop.permute.xlu0 %525
    %528 = vset.pattern.permute.xlu0 5
    %529 = vperm.xlu0 %528, %v179
    %v530 = vpop.permute.xlu0 %529
    %532 = vset.pattern.permute.xlu0 5
    %533 = vperm.xlu0 %532, %v184
    %v534 = vpop.permute.xlu0 %533
    %536 = vset.pattern.permute.xlu0 5
    %537 = vperm.xlu0 %536, %v187
    %v538 = vpop.permute.xlu0 %537
    %540 = vset.pattern.permute.xlu0 5
    %541 = vperm.xlu0 %540, %v192
    %v542 = vpop.permute.xlu0 %541
    %544 = vset.pattern.permute.xlu0 5
    %545 = vperm.xlu0 %544, %v195
    %v546 = vpop.permute.xlu0 %545
    %548 = vset.pattern.permute.xlu0 5
    %549 = vperm.xlu0 %548, %v200
    %v550 = vpop.permute.xlu0 %549
    %552 = vset.pattern.permute.xlu0 5
    %553 = vperm.xlu0 %552, %v203
    %v554 = vpop.permute.xlu0 %553
    %556 = vset.pattern.permute.xlu0 5
    %557 = vperm.xlu0 %556, %v208
    %v558 = vpop.permute.xlu0 %557
    %560 = vset.pattern.permute.xlu0 5
    %561 = vperm.xlu0 %560, %v211
    %v562 = vpop.permute.xlu0 %561
    %564 = vset.pattern.permute.xlu0 5
    %565 = vperm.xlu0 %564, %v216
    %v566 = vpop.permute.xlu0 %565
    %568 = vset.pattern.permute.xlu0 5
    %569 = vperm.xlu0 %568, %v219
    %v570 = vpop.permute.xlu0 %569
    %572 = vset.pattern.permute.xlu0 5
    %573 = vperm.xlu0 %572, %v224
    %v574 = vpop.permute.xlu0 %573
    %576 = vset.pattern.permute.xlu0 5
    %577 = vperm.xlu0 %576, %v227
    %v578 = vpop.permute.xlu0 %577
    %580 = vset.pattern.permute.xlu0 5
    %581 = vperm.xlu0 %580, %v232
    %v582 = vpop.permute.xlu0 %581
    %584 = vset.pattern.permute.xlu0 5
    %585 = vperm.xlu0 %584, %v235
    %v586 = vpop.permute.xlu0 %585
    %v588 = vlaneseq
    %v589 = vshrl.u32 %v588, 7
    %v590 = vsub.s32 1, %v589
    %v591 = vrot.slane %v239, %v590
    %v592 = vmul.f32 %v526, %v591
    %v593 = vmul.f32 %v530, %v591
    %v594 = vmul.f32 %v534, %v591
    %v595 = vmul.f32 %v538, %v591
    %v596 = vmul.f32 %v542, %v591
    %v597 = vmul.f32 %v546, %v591
    %v598 = vmul.f32 %v550, %v591
    %v599 = vmul.f32 %v554, %v591
    %v600 = vmul.f32 %v558, %v591
    %v601 = vmul.f32 %v562, %v591
    %v602 = vmul.f32 %v566, %v591
    %v603 = vmul.f32 %v570, %v591
    %v604 = vmul.f32 %v574, %v591
    %v605 = vmul.f32 %v578, %v591
    %v606 = vmul.f32 %v582, %v591
    %v607 = vmul.f32 %v586, %v591
    %v608 = vadd.f32 %v408, %v592
    %v609 = vadd.f32 %v409, %v593
    %v610 = vadd.f32 %v410, %v594
    %v611 = vadd.f32 %v411, %v595
    %v612 = vadd.f32 %v412, %v596
    %v613 = vadd.f32 %v413, %v597
    %v614 = vadd.f32 %v414, %v598
    %v615 = vadd.f32 %v415, %v599
    %v616 = vadd.f32 %v416, %v600
    %v617 = vadd.f32 %v417, %v601
    %v618 = vadd.f32 %v418, %v602
    %v619 = vadd.f32 %v419, %v603
    %v620 = vadd.f32 %v420, %v604
    %v621 = vadd.f32 %v421, %v605
    %v622 = vadd.f32 %v422, %v606
    %v623 = vadd.f32 %v423, %v607
    %624 = vset.pattern.permute.xlu0 2
    %625 = vperm.xlu0 %624, %v176
    %v626 = vpop.permute.xlu0 %625
    %628 = vset.pattern.permute.xlu0 2
    %629 = vperm.xlu0 %628, %v179
    %v630 = vpop.permute.xlu0 %629
    %632 = vset.pattern.permute.xlu0 2
    %633 = vperm.xlu0 %632, %v184
    %v634 = vpop.permute.xlu0 %633
    %636 = vset.pattern.permute.xlu0 2
    %637 = vperm.xlu0 %636, %v187
    %v638 = vpop.permute.xlu0 %637
    %640 = vset.pattern.permute.xlu0 2
    %641 = vperm.xlu0 %640, %v192
    %v642 = vpop.permute.xlu0 %641
    %644 = vset.pattern.permute.xlu0 2
    %645 = vperm.xlu0 %644, %v195
    %v646 = vpop.permute.xlu0 %645
    %648 = vset.pattern.permute.xlu0 2
    %649 = vperm.xlu0 %648, %v200
    %v650 = vpop.permute.xlu0 %649
    %652 = vset.pattern.permute.xlu0 2
    %653 = vperm.xlu0 %652, %v203
    %v654 = vpop.permute.xlu0 %653
    %656 = vset.pattern.permute.xlu0 2
    %657 = vperm.xlu0 %656, %v208
    %v658 = vpop.permute.xlu0 %657
    %660 = vset.pattern.permute.xlu0 2
    %661 = vperm.xlu0 %660, %v211
    %v662 = vpop.permute.xlu0 %661
    %664 = vset.pattern.permute.xlu0 2
    %665 = vperm.xlu0 %664, %v216
    %v666 = vpop.permute.xlu0 %665
    %668 = vset.pattern.permute.xlu0 2
    %669 = vperm.xlu0 %668, %v219
    %v670 = vpop.permute.xlu0 %669
    %672 = vset.pattern.permute.xlu0 2
    %673 = vperm.xlu0 %672, %v224
    %v674 = vpop.permute.xlu0 %673
    %676 = vset.pattern.permute.xlu0 2
    %677 = vperm.xlu0 %676, %v227
    %v678 = vpop.permute.xlu0 %677
    %680 = vset.pattern.permute.xlu0 2
    %681 = vperm.xlu0 %680, %v232
    %v682 = vpop.permute.xlu0 %681
    %684 = vset.pattern.permute.xlu0 2
    %685 = vperm.xlu0 %684, %v235
    %v686 = vpop.permute.xlu0 %685
    %v688 = vlaneseq
    %v689 = vshrl.u32 %v688, 7
    %v690 = vsub.s32 2, %v689
    %v691 = vrot.slane %v238, %v690
    %v692 = vmul.f32 %v626, %v691
    %v693 = vmul.f32 %v630, %v691
    %v694 = vmul.f32 %v634, %v691
    %v695 = vmul.f32 %v638, %v691
    %v696 = vmul.f32 %v642, %v691
    %v697 = vmul.f32 %v646, %v691
    %v698 = vmul.f32 %v650, %v691
    %v699 = vmul.f32 %v654, %v691
    %v700 = vmul.f32 %v658, %v691
    %v701 = vmul.f32 %v662, %v691
    %v702 = vmul.f32 %v666, %v691
    %v703 = vmul.f32 %v670, %v691
    %v704 = vmul.f32 %v674, %v691
    %v705 = vmul.f32 %v678, %v691
    %v706 = vmul.f32 %v682, %v691
    %v707 = vmul.f32 %v686, %v691
    %v708 = vadd.f32 %v508, %v692
    %v709 = vadd.f32 %v509, %v693
    %v710 = vadd.f32 %v510, %v694
    %v711 = vadd.f32 %v511, %v695
    %v712 = vadd.f32 %v512, %v696
    %v713 = vadd.f32 %v513, %v697
    %v714 = vadd.f32 %v514, %v698
    %v715 = vadd.f32 %v515, %v699
    %v716 = vadd.f32 %v516, %v700
    %v717 = vadd.f32 %v517, %v701
    %v718 = vadd.f32 %v518, %v702
    %v719 = vadd.f32 %v519, %v703
    %v720 = vadd.f32 %v520, %v704
    %v721 = vadd.f32 %v521, %v705
    %v722 = vadd.f32 %v522, %v706
    %v723 = vadd.f32 %v523, %v707
    %724 = vset.pattern.permute.xlu0 6
    %725 = vperm.xlu0 %724, %v176
    %v726 = vpop.permute.xlu0 %725
    %728 = vset.pattern.permute.xlu0 6
    %729 = vperm.xlu0 %728, %v179
    %v730 = vpop.permute.xlu0 %729
    %732 = vset.pattern.permute.xlu0 6
    %733 = vperm.xlu0 %732, %v184
    %v734 = vpop.permute.xlu0 %733
    %736 = vset.pattern.permute.xlu0 6
    %737 = vperm.xlu0 %736, %v187
    %v738 = vpop.permute.xlu0 %737
    %740 = vset.pattern.permute.xlu0 6
    %741 = vperm.xlu0 %740, %v192
    %v742 = vpop.permute.xlu0 %741
    %744 = vset.pattern.permute.xlu0 6
    %745 = vperm.xlu0 %744, %v195
    %v746 = vpop.permute.xlu0 %745
    %748 = vset.pattern.permute.xlu0 6
    %749 = vperm.xlu0 %748, %v200
    %v750 = vpop.permute.xlu0 %749
    %752 = vset.pattern.permute.xlu0 6
    %753 = vperm.xlu0 %752, %v203
    %v754 = vpop.permute.xlu0 %753
    %756 = vset.pattern.permute.xlu0 6
    %757 = vperm.xlu0 %756, %v208
    %v758 = vpop.permute.xlu0 %757
    %760 = vset.pattern.permute.xlu0 6
    %761 = vperm.xlu0 %760, %v211
    %v762 = vpop.permute.xlu0 %761
    %764 = vset.pattern.permute.xlu0 6
    %765 = vperm.xlu0 %764, %v216
    %v766 = vpop.permute.xlu0 %765
    %768 = vset.pattern.permute.xlu0 6
    %769 = vperm.xlu0 %768, %v219
    %v770 = vpop.permute.xlu0 %769
    %772 = vset.pattern.permute.xlu0 6
    %773 = vperm.xlu0 %772, %v224
    %v774 = vpop.permute.xlu0 %773
    %776 = vset.pattern.permute.xlu0 6
    %777 = vperm.xlu0 %776, %v227
    %v778 = vpop.permute.xlu0 %777
    %780 = vset.pattern.permute.xlu0 6
    %781 = vperm.xlu0 %780, %v232
    %v782 = vpop.permute.xlu0 %781
    %784 = vset.pattern.permute.xlu0 6
    %785 = vperm.xlu0 %784, %v235
    %v786 = vpop.permute.xlu0 %785
    %v788 = vlaneseq
    %v789 = vshrl.u32 %v788, 7
    %v790 = vsub.s32 2, %v789
    %v791 = vrot.slane %v239, %v790
    %v792 = vmul.f32 %v726, %v791
    %v793 = vmul.f32 %v730, %v791
    %v794 = vmul.f32 %v734, %v791
    %v795 = vmul.f32 %v738, %v791
    %v796 = vmul.f32 %v742, %v791
    %v797 = vmul.f32 %v746, %v791
    %v798 = vmul.f32 %v750, %v791
    %v799 = vmul.f32 %v754, %v791
    %v800 = vmul.f32 %v758, %v791
    %v801 = vmul.f32 %v762, %v791
    %v802 = vmul.f32 %v766, %v791
    %v803 = vmul.f32 %v770, %v791
    %v804 = vmul.f32 %v774, %v791
    %v805 = vmul.f32 %v778, %v791
    %v806 = vmul.f32 %v782, %v791
    %v807 = vmul.f32 %v786, %v791
    %v808 = vadd.f32 %v608, %v792
    %v809 = vadd.f32 %v609, %v793
    %v810 = vadd.f32 %v610, %v794
    %v811 = vadd.f32 %v611, %v795
    %v812 = vadd.f32 %v612, %v796
    %v813 = vadd.f32 %v613, %v797
    %v814 = vadd.f32 %v614, %v798
    %v815 = vadd.f32 %v615, %v799
    %v816 = vadd.f32 %v616, %v800
    %v817 = vadd.f32 %v617, %v801
    %v818 = vadd.f32 %v618, %v802
    %v819 = vadd.f32 %v619, %v803
    %v820 = vadd.f32 %v620, %v804
    %v821 = vadd.f32 %v621, %v805
    %v822 = vadd.f32 %v622, %v806
    %v823 = vadd.f32 %v623, %v807
    %824 = vset.pattern.permute.xlu0 3
    %825 = vperm.xlu0 %824, %v176
    %v826 = vpop.permute.xlu0 %825
    %828 = vset.pattern.permute.xlu0 3
    %829 = vperm.xlu0 %828, %v179
    %v830 = vpop.permute.xlu0 %829
    %832 = vset.pattern.permute.xlu0 3
    %833 = vperm.xlu0 %832, %v184
    %v834 = vpop.permute.xlu0 %833
    %836 = vset.pattern.permute.xlu0 3
    %837 = vperm.xlu0 %836, %v187
    %v838 = vpop.permute.xlu0 %837
    %840 = vset.pattern.permute.xlu0 3
    %841 = vperm.xlu0 %840, %v192
    %v842 = vpop.permute.xlu0 %841
    %844 = vset.pattern.permute.xlu0 3
    %845 = vperm.xlu0 %844, %v195
    %v846 = vpop.permute.xlu0 %845
    %848 = vset.pattern.permute.xlu0 3
    %849 = vperm.xlu0 %848, %v200
    %v850 = vpop.permute.xlu0 %849
    %852 = vset.pattern.permute.xlu0 3
    %853 = vperm.xlu0 %852, %v203
    %v854 = vpop.permute.xlu0 %853
    %856 = vset.pattern.permute.xlu0 3
    %857 = vperm.xlu0 %856, %v208
    %v858 = vpop.permute.xlu0 %857
    %860 = vset.pattern.permute.xlu0 3
    %861 = vperm.xlu0 %860, %v211
    %v862 = vpop.permute.xlu0 %861
    %864 = vset.pattern.permute.xlu0 3
    %865 = vperm.xlu0 %864, %v216
    %v866 = vpop.permute.xlu0 %865
    %868 = vset.pattern.permute.xlu0 3
    %869 = vperm.xlu0 %868, %v219
    %v870 = vpop.permute.xlu0 %869
    %872 = vset.pattern.permute.xlu0 3
    %873 = vperm.xlu0 %872, %v224
    %v874 = vpop.permute.xlu0 %873
    %876 = vset.pattern.permute.xlu0 3
    %877 = vperm.xlu0 %876, %v227
    %v878 = vpop.permute.xlu0 %877
    %880 = vset.pattern.permute.xlu0 3
    %881 = vperm.xlu0 %880, %v232
    %v882 = vpop.permute.xlu0 %881
    %884 = vset.pattern.permute.xlu0 3
    %885 = vperm.xlu0 %884, %v235
    %v886 = vpop.permute.xlu0 %885
    %v888 = vlaneseq
    %v889 = vshrl.u32 %v888, 7
    %v890 = vsub.s32 3, %v889
    %v891 = vrot.slane %v238, %v890
    %v892 = vmul.f32 %v826, %v891
    %v893 = vmul.f32 %v830, %v891
    %v894 = vmul.f32 %v834, %v891
    %v895 = vmul.f32 %v838, %v891
    %v896 = vmul.f32 %v842, %v891
    %v897 = vmul.f32 %v846, %v891
    %v898 = vmul.f32 %v850, %v891
    %v899 = vmul.f32 %v854, %v891
    %v900 = vmul.f32 %v858, %v891
    %v901 = vmul.f32 %v862, %v891
    %v902 = vmul.f32 %v866, %v891
    %v903 = vmul.f32 %v870, %v891
    %v904 = vmul.f32 %v874, %v891
    %v905 = vmul.f32 %v878, %v891
    %v906 = vmul.f32 %v882, %v891
    %v907 = vmul.f32 %v886, %v891
    %v908 = vadd.f32 %v708, %v892
    %v909 = vadd.f32 %v709, %v893
    %v910 = vadd.f32 %v710, %v894
    %v911 = vadd.f32 %v711, %v895
    %v912 = vadd.f32 %v712, %v896
    %v913 = vadd.f32 %v713, %v897
    %v914 = vadd.f32 %v714, %v898
    %v915 = vadd.f32 %v715, %v899
    %v916 = vadd.f32 %v716, %v900
    %v917 = vadd.f32 %v717, %v901
    %v918 = vadd.f32 %v718, %v902
    %v919 = vadd.f32 %v719, %v903
    %v920 = vadd.f32 %v720, %v904
    %v921 = vadd.f32 %v721, %v905
    %v922 = vadd.f32 %v722, %v906
    %v923 = vadd.f32 %v723, %v907
    %924 = vset.pattern.permute.xlu0 7
    %925 = vperm.xlu0 %924, %v176
    %v926 = vpop.permute.xlu0 %925
    %928 = vset.pattern.permute.xlu0 7
    %929 = vperm.xlu0 %928, %v179
    %v930 = vpop.permute.xlu0 %929
    %932 = vset.pattern.permute.xlu0 7
    %933 = vperm.xlu0 %932, %v184
    %v934 = vpop.permute.xlu0 %933
    %936 = vset.pattern.permute.xlu0 7
    %937 = vperm.xlu0 %936, %v187
    %v938 = vpop.permute.xlu0 %937
    %940 = vset.pattern.permute.xlu0 7
    %941 = vperm.xlu0 %940, %v192
    %v942 = vpop.permute.xlu0 %941
    %944 = vset.pattern.permute.xlu0 7
    %945 = vperm.xlu0 %944, %v195
    %v946 = vpop.permute.xlu0 %945
    %948 = vset.pattern.permute.xlu0 7
    %949 = vperm.xlu0 %948, %v200
    %v950 = vpop.permute.xlu0 %949
    %952 = vset.pattern.permute.xlu0 7
    %953 = vperm.xlu0 %952, %v203
    %v954 = vpop.permute.xlu0 %953
    %956 = vset.pattern.permute.xlu0 7
    %957 = vperm.xlu0 %956, %v208
    %v958 = vpop.permute.xlu0 %957
    %960 = vset.pattern.permute.xlu0 7
    %961 = vperm.xlu0 %960, %v211
    %v962 = vpop.permute.xlu0 %961
    %964 = vset.pattern.permute.xlu0 7
    %965 = vperm.xlu0 %964, %v216
    %v966 = vpop.permute.xlu0 %965
    %968 = vset.pattern.permute.xlu0 7
    %969 = vperm.xlu0 %968, %v219
    %v970 = vpop.permute.xlu0 %969
    %972 = vset.pattern.permute.xlu0 7
    %973 = vperm.xlu0 %972, %v224
    %v974 = vpop.permute.xlu0 %973
    %976 = vset.pattern.permute.xlu0 7
    %977 = vperm.xlu0 %976, %v227
    %v978 = vpop.permute.xlu0 %977
    %980 = vset.pattern.permute.xlu0 7
    %981 = vperm.xlu0 %980, %v232
    %v982 = vpop.permute.xlu0 %981
    %984 = vset.pattern.permute.xlu0 7
    %985 = vperm.xlu0 %984, %v235
    %v986 = vpop.permute.xlu0 %985
    %v988 = vlaneseq
    %v989 = vshrl.u32 %v988, 7
    %v990 = vsub.s32 3, %v989
    %v991 = vrot.slane %v239, %v990
    %v992 = vmul.f32 %v926, %v991
    %v993 = vmul.f32 %v930, %v991
    %v994 = vmul.f32 %v934, %v991
    %v995 = vmul.f32 %v938, %v991
    %v996 = vmul.f32 %v942, %v991
    %v997 = vmul.f32 %v946, %v991
    %v998 = vmul.f32 %v950, %v991
    %v999 = vmul.f32 %v954, %v991
    %v1000 = vmul.f32 %v958, %v991
    %v1001 = vmul.f32 %v962, %v991
    %v1002 = vmul.f32 %v966, %v991
    %v1003 = vmul.f32 %v970, %v991
    %v1004 = vmul.f32 %v974, %v991
    %v1005 = vmul.f32 %v978, %v991
    %v1006 = vmul.f32 %v982, %v991
    %v1007 = vmul.f32 %v986, %v991
    %v1008 = vadd.f32 %v808, %v992
    %v1009 = vadd.f32 %v809, %v993
    %v1010 = vadd.f32 %v810, %v994
    %v1011 = vadd.f32 %v811, %v995
    %v1012 = vadd.f32 %v812, %v996
    %v1013 = vadd.f32 %v813, %v997
    %v1014 = vadd.f32 %v814, %v998
    %v1015 = vadd.f32 %v815, %v999
    %v1016 = vadd.f32 %v816, %v1000
    %v1017 = vadd.f32 %v817, %v1001
    %v1018 = vadd.f32 %v818, %v1002
    %v1019 = vadd.f32 %v819, %v1003
    %v1020 = vadd.f32 %v820, %v1004
    %v1021 = vadd.f32 %v821, %v1005
    %v1022 = vadd.f32 %v822, %v1006
    %v1023 = vadd.f32 %v823, %v1007
    %v1024 = vld [vmem:[#allocation5] sm:$0xf]
    %v1025 = vld [vmem:[#allocation5 + $0xc] sm:$0xf]
    %v1026 = vld [vmem:[#allocation5 + $0x18] sm:$0xf]
    %v1027 = vld [vmem:[#allocation5 + $0x24] sm:$0xf]
    %v1028 = vld [vmem:[#allocation5 + $0x30] sm:$0xf]
    %v1029 = vld [vmem:[#allocation5 + $0x3c] sm:$0xf]
    %v1030 = vld [vmem:[#allocation5 + $0x48] sm:$0xf]
    %v1031 = vld [vmem:[#allocation5 + $0x54] sm:$0xf]
    %v1032 = vld [vmem:[#allocation5 + $0x60] sm:$0xf]
    %v1033 = vld [vmem:[#allocation5 + $0x6c] sm:$0xf]
    %v1034 = vld [vmem:[#allocation5 + $0x78] sm:$0xf]
    %v1035 = vld [vmem:[#allocation5 + $0x84] sm:$0xf]
    %v1036 = vld [vmem:[#allocation5 + $0x90] sm:$0xf]
    %v1037 = vld [vmem:[#allocation5 + $0x9c] sm:$0xf]
    %v1038 = vld [vmem:[#allocation5 + $0xa8] sm:$0xf]
    %v1039 = vld [vmem:[#allocation5 + $0xb4] sm:$0xf]
    %v1040 = vld [vmem:[%s2] sm:$0x1]
    %v1042 = vlaneseq
    %v1043 = vshrl.u32 %v1042, 7
    %v1044 = vsub.s32 0, %v1043
    %v1045 = vrot.slane %v1040, %v1044
    %v1063 = vunpack.c.l.b16 %v1024
    %v1064 = vunpack.c.l.b16 %v1025
    %v1065 = vunpack.c.l.b16 %v1026
    %v1066 = vunpack.c.l.b16 %v1027
    %v1067 = vunpack.c.l.b16 %v1028
    %v1068 = vunpack.c.l.b16 %v1029
    %v1069 = vunpack.c.l.b16 %v1030
    %v1070 = vunpack.c.l.b16 %v1031
    %v1071 = vunpack.c.l.b16 %v1032
    %v1072 = vunpack.c.l.b16 %v1033
    %v1073 = vunpack.c.l.b16 %v1034
    %v1074 = vunpack.c.l.b16 %v1035
    %v1075 = vunpack.c.l.b16 %v1036
    %v1076 = vunpack.c.l.b16 %v1037
    %v1077 = vunpack.c.l.b16 %v1038
    %v1078 = vunpack.c.l.b16 %v1039
    %v1079 = vpack.c.b16 %v1064, %v1063
    %v1080 = vpack.c.b16 %v1066, %v1065
    %v1081 = vpack.c.b16 %v1068, %v1067
    %v1082 = vpack.c.b16 %v1070, %v1069
    %v1083 = vpack.c.b16 %v1072, %v1071
    %v1084 = vpack.c.b16 %v1074, %v1073
    %v1085 = vpack.c.b16 %v1076, %v1075
    %v1086 = vpack.c.b16 %v1078, %v1077
    %1095 = vmatprep.subr.bf16.mxu0 0
    %1096 = vmatpush1.bf16.msra.mxu0 %v1079
    %1097 = vmatprep.subr.bf16.mxu0 0
    %1098 = vmatpush1.bf16.msra.mxu0 %v1080
    %1099 = vmatprep.subr.bf16.mxu0 0
    %1100 = vmatpush1.bf16.msra.mxu0 %v1081
    %1101 = vmatprep.subr.bf16.mxu0 0
    %1102 = vmatpush1.bf16.msra.mxu0 %v1082
    %1103 = vmatprep.subr.bf16.mxu0 0
    %1104 = vmatpush1.bf16.msra.mxu0 %v1083
    %1105 = vmatprep.subr.bf16.mxu0 0
    %1106 = vmatpush1.bf16.msra.mxu0 %v1084
    %1107 = vmatprep.subr.bf16.mxu0 0
    %1108 = vmatpush1.bf16.msra.mxu0 %v1085
    %1109 = vmatprep.subr.bf16.mxu0 0
    %1110 = vmatpush1.bf16.msra.mxu0 %v1086
    %1111 = vmatprep.subr.bf16.mxu0 0
    %1112 = vmatpush1.bf16.msra.mxu0 0
    %1113 = vmatprep.subr.bf16.mxu0 0
    %1114 = vmatpush1.bf16.msra.mxu0 0
    %1115 = vmatprep.subr.bf16.mxu0 0
    %1116 = vmatpush1.bf16.msra.mxu0 0
    %1117 = vmatprep.subr.bf16.mxu0 0
    %1118 = vmatpush1.bf16.msra.mxu0 0
    %1119 = vmatprep.subr.bf16.mxu0 0
    %1120 = vmatpush1.bf16.msra.mxu0 0
    %1121 = vmatprep.subr.bf16.mxu0 0
    %1122 = vmatpush1.bf16.msra.mxu0 0
    %1123 = vmatprep.subr.bf16.mxu0 0
    %1124 = vmatpush1.bf16.msra.mxu0 0
    %1125 = vmatprep.subr.bf16.mxu0 0
    %1126 = vmatpush1.bf16.msra.mxu0 0
    %1127 = vmatprep.mubr.bf16.mxu0 0
    %1128 = vmatmul.mubr.bf16.gmra.mrb[0].mxu0 %v69
    %v1129 = vpop.f32.mrb[0].mxu0
    %v1130 = vadd.f32 %v1045, %v1129
    %v1131 = vpop.f32.mrb[0].mxu0
    %v1132 = vpop.f32.mrb[0].mxu0
    %v1133 = vadd.f32 %v1045, %v1132
    %v1134 = vpop.f32.mrb[0].mxu0
    %1135 = vmatprep.mubr.bf16.mxu0 0
    %1136 = vmatmul.mubr.bf16.gmra.mrb[0].mxu0 %v70
    %v1137 = vpop.f32.mrb[0].mxu0
    %v1138 = vadd.f32 %v1045, %v1137
    %v1139 = vpop.f32.mrb[0].mxu0
    %v1140 = vpop.f32.mrb[0].mxu0
    %v1141 = vadd.f32 %v1045, %v1140
    %v1142 = vpop.f32.mrb[0].mxu0
    %1143 = vmatprep.mubr.bf16.mxu0 0
    %1144 = vmatmul.mubr.bf16.gmra.mrb[0].mxu0 %v71
    %v1145 = vpop.f32.mrb[0].mxu0
    %v1146 = vadd.f32 %v1045, %v1145
    %v1147 = vpop.f32.mrb[0].mxu0
    %v1148 = vpop.f32.mrb[0].mxu0
    %v1149 = vadd.f32 %v1045, %v1148
    %v1150 = vpop.f32.mrb[0].mxu0
    %1151 = vmatprep.mubr.bf16.mxu0 0
    %1152 = vmatmul.mubr.bf16.gmra.mrb[0].mxu0 %v72
    %v1153 = vpop.f32.mrb[0].mxu0
    %v1154 = vadd.f32 %v1045, %v1153
    %v1155 = vpop.f32.mrb[0].mxu0
    %v1156 = vpop.f32.mrb[0].mxu0
    %v1157 = vadd.f32 %v1045, %v1156
    %v1158 = vpop.f32.mrb[0].mxu0
    %1159 = vmatprep.mubr.bf16.mxu0 0
    %1160 = vmatmul.mubr.bf16.gmra.mrb[0].mxu0 %v73
    %v1161 = vpop.f32.mrb[0].mxu0
    %v1162 = vadd.f32 %v1045, %v1161
    %v1163 = vpop.f32.mrb[0].mxu0
    %v1164 = vpop.f32.mrb[0].mxu0
    %v1165 = vadd.f32 %v1045, %v1164
    %v1166 = vpop.f32.mrb[0].mxu0
    %1167 = vmatprep.mubr.bf16.mxu0 0
    %1168 = vmatmul.mubr.bf16.gmra.mrb[0].mxu0 %v74
    %v1169 = vpop.f32.mrb[0].mxu0
    %v1170 = vadd.f32 %v1045, %v1169
    %v1171 = vpop.f32.mrb[0].mxu0
    %v1172 = vpop.f32.mrb[0].mxu0
    %v1173 = vadd.f32 %v1045, %v1172
    %v1174 = vpop.f32.mrb[0].mxu0
    %1175 = vmatprep.mubr.bf16.mxu0 0
    %1176 = vmatmul.mubr.bf16.gmra.mrb[0].mxu0 %v75
    %v1177 = vpop.f32.mrb[0].mxu0
    %v1178 = vadd.f32 %v1045, %v1177
    %v1179 = vpop.f32.mrb[0].mxu0
    %v1180 = vpop.f32.mrb[0].mxu0
    %v1181 = vadd.f32 %v1045, %v1180
    %v1182 = vpop.f32.mrb[0].mxu0
    %1183 = vmatprep.mubr.bf16.mxu0 0
    %1184 = vmatmul.mubr.bf16.gmra.mrb[0].mxu0 %v76
    %v1185 = vpop.f32.mrb[0].mxu0
    %v1186 = vadd.f32 %v1045, %v1185
    %v1187 = vpop.f32.mrb[0].mxu0
    %v1188 = vpop.f32.mrb[0].mxu0
    %v1189 = vadd.f32 %v1045, %v1188
    %v1190 = vpop.f32.mrb[0].mxu0
    %1191 = vdwg.mxu0
    %v1192 = vadd.f32 %v1130, %v908
    %v1193 = vadd.f32 %v1133, %v909
    %v1194 = vadd.f32 %v1138, %v910
    %v1195 = vadd.f32 %v1141, %v911
    %v1196 = vadd.f32 %v1146, %v912
    %v1197 = vadd.f32 %v1149, %v913
    %v1198 = vadd.f32 %v1154, %v914
    %v1199 = vadd.f32 %v1157, %v915
    %v1200 = vadd.f32 %v1162, %v916
    %v1201 = vadd.f32 %v1165, %v917
    %v1202 = vadd.f32 %v1170, %v918
    %v1203 = vadd.f32 %v1173, %v919
    %v1204 = vadd.f32 %v1178, %v920
    %v1205 = vadd.f32 %v1181, %v921
    %v1206 = vadd.f32 %v1186, %v922
    %v1207 = vadd.f32 %v1189, %v923
    %1208 = vst [vmem:[#allocation7] sm:$0xff] %v1192
    %1209 = vst [vmem:[#allocation7 + $0x18] sm:$0xff] %v1193
    %1210 = vst [vmem:[#allocation7 + $0x30] sm:$0xff] %v1194
    %1211 = vst [vmem:[#allocation7 + $0x48] sm:$0xff] %v1195
    %1212 = vst [vmem:[#allocation7 + $0x60] sm:$0xff] %v1196
    %1213 = vst [vmem:[#allocation7 + $0x78] sm:$0xff] %v1197
    %1214 = vst [vmem:[#allocation7 + $0x90] sm:$0xff] %v1198
    %1215 = vst [vmem:[#allocation7 + $0xa8] sm:$0xff] %v1199
    %1216 = vst [vmem:[#allocation7 + $0xc0] sm:$0xff] %v1200
    %1217 = vst [vmem:[#allocation7 + $0xd8] sm:$0xff] %v1201
    %1218 = vst [vmem:[#allocation7 + $0xf0] sm:$0xff] %v1202
    %1219 = vst [vmem:[#allocation7 + $0x108] sm:$0xff] %v1203
    %1220 = vst [vmem:[#allocation7 + $0x120] sm:$0xff] %v1204
    %1221 = vst [vmem:[#allocation7 + $0x138] sm:$0xff] %v1205
    %1222 = vst [vmem:[#allocation7 + $0x150] sm:$0xff] %v1206
    %1223 = vst [vmem:[#allocation7 + $0x168] sm:$0xff] %v1207
    %v1224 = vld [vmem:[#allocation5 + $0x4] sm:$0xf]
    %v1225 = vld [vmem:[#allocation5 + $0x10] sm:$0xf]
    %v1226 = vld [vmem:[#allocation5 + $0x1c] sm:$0xf]
    %v1227 = vld [vmem:[#allocation5 + $0x28] sm:$0xf]
    %v1228 = vld [vmem:[#allocation5 + $0x34] sm:$0xf]
    %v1229 = vld [vmem:[#allocation5 + $0x40] sm:$0xf]
    %v1230 = vld [vmem:[#allocation5 + $0x4c] sm:$0xf]
    %v1231 = vld [vmem:[#allocation5 + $0x58] sm:$0xf]
    %v1232 = vld [vmem:[#allocation5 + $0x64] sm:$0xf]
    %v1233 = vld [vmem:[#allocation5 + $0x70] sm:$0xf]
    %v1234 = vld [vmem:[#allocation5 + $0x7c] sm:$0xf]
    %v1235 = vld [vmem:[#allocation5 + $0x88] sm:$0xf]
    %v1236 = vld [vmem:[#allocation5 + $0x94] sm:$0xf]
    %v1237 = vld [vmem:[#allocation5 + $0xa0] sm:$0xf]
    %v1238 = vld [vmem:[#allocation5 + $0xac] sm:$0xf]
    %v1239 = vld [vmem:[#allocation5 + $0xb8] sm:$0xf]
    %v1240 = vld [vmem:[%s2 + $0x1] sm:$0x1]
    %v1242 = vlaneseq
    %v1243 = vshrl.u32 %v1242, 7
    %v1244 = vsub.s32 0, %v1243
    %v1245 = vrot.slane %v1240, %v1244
    %v1263 = vunpack.c.l.b16 %v1224
    %v1264 = vunpack.c.l.b16 %v1225
    %v1265 = vunpack.c.l.b16 %v1226
    %v1266 = vunpack.c.l.b16 %v1227
    %v1267 = vunpack.c.l.b16 %v1228
    %v1268 = vunpack.c.l.b16 %v1229
    %v1269 = vunpack.c.l.b16 %v1230
    %v1270 = vunpack.c.l.b16 %v1231
    %v1271 = vunpack.c.l.b16 %v1232
    %v1272 = vunpack.c.l.b16 %v1233
    %v1273 = vunpack.c.l.b16 %v1234
    %v1274 = vunpack.c.l.b16 %v1235
    %v1275 = vunpack.c.l.b16 %v1236
    %v1276 = vunpack.c.l.b16 %v1237
    %v1277 = vunpack.c.l.b16 %v1238
    %v1278 = vunpack.c.l.b16 %v1239
    %v1279 = vpack.c.b16 %v1264, %v1263
    %v1280 = vpack.c.b16 %v1266, %v1265
    %v1281 = vpack.c.b16 %v1268, %v1267
    %v1282 = vpack.c.b16 %v1270, %v1269
    %v1283 = vpack.c.b16 %v1272, %v1271
    %v1284 = vpack.c.b16 %v1274, %v1273
    %v1285 = vpack.c.b16 %v1276, %v1275
    %v1286 = vpack.c.b16 %v1278, %v1277
    %1295 = vmatprep.subr.bf16.mxu0 0
    %1296 = vmatpush1.bf16.msra.mxu0 %v1279
    %1297 = vmatprep.subr.bf16.mxu0 0
    %1298 = vmatpush1.bf16.msra.mxu0 %v1280
    %1299 = vmatprep.subr.bf16.mxu0 0
    %1300 = vmatpush1.bf16.msra.mxu0 %v1281
    %1301 = vmatprep.subr.bf16.mxu0 0
    %1302 = vmatpush1.bf16.msra.mxu0 %v1282
    %1303 = vmatprep.subr.bf16.mxu0 0
    %1304 = vmatpush1.bf16.msra.mxu0 %v1283
    %1305 = vmatprep.subr.bf16.mxu0 0
    %1306 = vmatpush1.bf16.msra.mxu0 %v1284
    %1307 = vmatprep.subr.bf16.mxu0 0
    %1308 = vmatpush1.bf16.msra.mxu0 %v1285
    %1309 = vmatprep.subr.bf16.mxu0 0
    %1310 = vmatpush1.bf16.msra.mxu0 %v1286
    %1311 = vmatprep.subr.bf16.mxu0 0
    %1312 = vmatpush1.bf16.msra.mxu0 0
    %1313 = vmatprep.subr.bf16.mxu0 0
    %1314 = vmatpush1.bf16.msra.mxu0 0
    %1315 = vmatprep.subr.bf16.mxu0 0
    %1316 = vmatpush1.bf16.msra.mxu0 0
    %1317 = vmatprep.subr.bf16.mxu0 0
    %1318 = vmatpush1.bf16.msra.mxu0 0
    %1319 = vmatprep.subr.bf16.mxu0 0
    %1320 = vmatpush1.bf16.msra.mxu0 0
    %1321 = vmatprep.subr.bf16.mxu0 0
    %1322 = vmatpush1.bf16.msra.mxu0 0
    %1323 = vmatprep.subr.bf16.mxu0 0
    %1324 = vmatpush1.bf16.msra.mxu0 0
    %1325 = vmatprep.subr.bf16.mxu0 0
    %1326 = vmatpush1.bf16.msra.mxu0 0
    %1327 = vmatprep.mubr.bf16.mxu0 0
    %1328 = vmatmul.mubr.bf16.gmra.mrb[0].mxu0 %v69
    %v1329 = vpop.f32.mrb[0].mxu0
    %v1330 = vadd.f32 %v1245, %v1329
    %v1331 = vpop.f32.mrb[0].mxu0
    %v1332 = vpop.f32.mrb[0].mxu0
    %v1333 = vadd.f32 %v1245, %v1332
    %v1334 = vpop.f32.mrb[0].mxu0
    %1335 = vmatprep.mubr.bf16.mxu0 0
    %1336 = vmatmul.mubr.bf16.gmra.mrb[0].mxu0 %v70
    %v1337 = vpop.f32.mrb[0].mxu0
    %v1338 = vadd.f32 %v1245, %v1337
    %v1339 = vpop.f32.mrb[0].mxu0
    %v1340 = vpop.f32.mrb[0].mxu0
    %v1341 = vadd.f32 %v1245, %v1340
    %v1342 = vpop.f32.mrb[0].mxu0
    %1343 = vmatprep.mubr.bf16.mxu0 0
    %1344 = vmatmul.mubr.bf16.gmra.mrb[0].mxu0 %v71
    %v1345 = vpop.f32.mrb[0].mxu0
    %v1346 = vadd.f32 %v1245, %v1345
    %v1347 = vpop.f32.mrb[0].mxu0
    %v1348 = vpop.f32.mrb[0].mxu0
    %v1349 = vadd.f32 %v1245, %v1348
    %v1350 = vpop.f32.mrb[0].mxu0
    %1351 = vmatprep.mubr.bf16.mxu0 0
    %1352 = vmatmul.mubr.bf16.gmra.mrb[0].mxu0 %v72
    %v1353 = vpop.f32.mrb[0].mxu0
    %v1354 = vadd.f32 %v1245, %v1353
    %v1355 = vpop.f32.mrb[0].mxu0
    %v1356 = vpop.f32.mrb[0].mxu0
    %v1357 = vadd.f32 %v1245, %v1356
    %v1358 = vpop.f32.mrb[0].mxu0
    %1359 = vmatprep.mubr.bf16.mxu0 0
    %1360 = vmatmul.mubr.bf16.gmra.mrb[0].mxu0 %v73
    %v1361 = vpop.f32.mrb[0].mxu0
    %v1362 = vadd.f32 %v1245, %v1361
    %v1363 = vpop.f32.mrb[0].mxu0
    %v1364 = vpop.f32.mrb[0].mxu0
    %v1365 = vadd.f32 %v1245, %v1364
    %v1366 = vpop.f32.mrb[0].mxu0
    %1367 = vmatprep.mubr.bf16.mxu0 0
    %1368 = vmatmul.mubr.bf16.gmra.mrb[0].mxu0 %v74
    %v1369 = vpop.f32.mrb[0].mxu0
    %v1370 = vadd.f32 %v1245, %v1369
    %v1371 = vpop.f32.mrb[0].mxu0
    %v1372 = vpop.f32.mrb[0].mxu0
    %v1373 = vadd.f32 %v1245, %v1372
    %v1374 = vpop.f32.mrb[0].mxu0
    %1375 = vmatprep.mubr.bf16.mxu0 0
    %1376 = vmatmul.mubr.bf16.gmra.mrb[0].mxu0 %v75
    %v1377 = vpop.f32.mrb[0].mxu0
    %v1378 = vadd.f32 %v1245, %v1377
    %v1379 = vpop.f32.mrb[0].mxu0
    %v1380 = vpop.f32.mrb[0].mxu0
    %v1381 = vadd.f32 %v1245, %v1380
    %v1382 = vpop.f32.mrb[0].mxu0
    %1383 = vmatprep.mubr.bf16.mxu0 0
    %1384 = vmatmul.mubr.bf16.gmra.mrb[0].mxu0 %v76
    %v1385 = vpop.f32.mrb[0].mxu0
    %v1386 = vadd.f32 %v1245, %v1385
    %v1387 = vpop.f32.mrb[0].mxu0
    %v1388 = vpop.f32.mrb[0].mxu0
    %v1389 = vadd.f32 %v1245, %v1388
    %v1390 = vpop.f32.mrb[0].mxu0
    %1391 = vdwg.mxu0
    %1392 = vst [vmem:[#allocation7 + $0x8] sm:$0xff] %v1330
    %1393 = vst [vmem:[#allocation7 + $0x20] sm:$0xff] %v1333
    %1394 = vst [vmem:[#allocation7 + $0x38] sm:$0xff] %v1338
    %1395 = vst [vmem:[#allocation7 + $0x50] sm:$0xff] %v1341
    %1396 = vst [vmem:[#allocation7 + $0x68] sm:$0xff] %v1346
    %1397 = vst [vmem:[#allocation7 + $0x80] sm:$0xff] %v1349
    %1398 = vst [vmem:[#allocation7 + $0x98] sm:$0xff] %v1354
    %1399 = vst [vmem:[#allocation7 + $0xb0] sm:$0xff] %v1357
    %1400 = vst [vmem:[#allocation7 + $0xc8] sm:$0xff] %v1362
    %1401 = vst [vmem:[#allocation7 + $0xe0] sm:$0xff] %v1365
    %1402 = vst [vmem:[#allocation7 + $0xf8] sm:$0xff] %v1370
    %1403 = vst [vmem:[#allocation7 + $0x110] sm:$0xff] %v1373
    %1404 = vst [vmem:[#allocation7 + $0x128] sm:$0xff] %v1378
    %1405 = vst [vmem:[#allocation7 + $0x140] sm:$0xff] %v1381
    %1406 = vst [vmem:[#allocation7 + $0x158] sm:$0xff] %v1386
    %1407 = vst [vmem:[#allocation7 + $0x170] sm:$0xff] %v1389
    %v1408 = vld [vmem:[#allocation5 + $0x8] sm:$0xf]
    %v1409 = vld [vmem:[#allocation5 + $0x14] sm:$0xf]
    %v1410 = vld [vmem:[#allocation5 + $0x20] sm:$0xf]
    %v1411 = vld [vmem:[#allocation5 + $0x2c] sm:$0xf]
    %v1412 = vld [vmem:[#allocation5 + $0x38] sm:$0xf]
    %v1413 = vld [vmem:[#allocation5 + $0x44] sm:$0xf]
    %v1414 = vld [vmem:[#allocation5 + $0x50] sm:$0xf]
    %v1415 = vld [vmem:[#allocation5 + $0x5c] sm:$0xf]
    %v1416 = vld [vmem:[#allocation5 + $0x68] sm:$0xf]
    %v1417 = vld [vmem:[#allocation5 + $0x74] sm:$0xf]
    %v1418 = vld [vmem:[#allocation5 + $0x80] sm:$0xf]
    %v1419 = vld [vmem:[#allocation5 + $0x8c] sm:$0xf]
    %v1420 = vld [vmem:[#allocation5 + $0x98] sm:$0xf]
    %v1421 = vld [vmem:[#allocation5 + $0xa4] sm:$0xf]
    %v1422 = vld [vmem:[#allocation5 + $0xb0] sm:$0xf]
    %v1423 = vld [vmem:[#allocation5 + $0xbc] sm:$0xf]
    %v1424 = vld [vmem:[%s2 + $0x2] sm:$0x1]
    %v1426 = vlaneseq
    %v1427 = vshrl.u32 %v1426, 7
    %v1428 = vsub.s32 0, %v1427
    %v1429 = vrot.slane %v1424, %v1428
    %v1447 = vunpack.c.l.b16 %v1408
    %v1448 = vunpack.c.l.b16 %v1409
    %v1449 = vunpack.c.l.b16 %v1410
    %v1450 = vunpack.c.l.b16 %v1411
    %v1451 = vunpack.c.l.b16 %v1412
    %v1452 = vunpack.c.l.b16 %v1413
    %v1453 = vunpack.c.l.b16 %v1414
    %v1454 = vunpack.c.l.b16 %v1415
    %v1455 = vunpack.c.l.b16 %v1416
    %v1456 = vunpack.c.l.b16 %v1417
    %v1457 = vunpack.c.l.b16 %v1418
    %v1458 = vunpack.c.l.b16 %v1419
    %v1459 = vunpack.c.l.b16 %v1420
    %v1460 = vunpack.c.l.b16 %v1421
    %v1461 = vunpack.c.l.b16 %v1422
    %v1462 = vunpack.c.l.b16 %v1423
    %v1463 = vpack.c.b16 %v1448, %v1447
    %v1464 = vpack.c.b16 %v1450, %v1449
    %v1465 = vpack.c.b16 %v1452, %v1451
    %v1466 = vpack.c.b16 %v1454, %v1453
    %v1467 = vpack.c.b16 %v1456, %v1455
    %v1468 = vpack.c.b16 %v1458, %v1457
    %v1469 = vpack.c.b16 %v1460, %v1459
    %v1470 = vpack.c.b16 %v1462, %v1461
    %1479 = vmatprep.subr.bf16.mxu0 0
    %1480 = vmatpush1.bf16.msra.mxu0 %v1463
    %1481 = vmatprep.subr.bf16.mxu0 0
    %1482 = vmatpush1.bf16.msra.mxu0 %v1464
    %1483 = vmatprep.subr.bf16.mxu0 0
    %1484 = vmatpush1.bf16.msra.mxu0 %v1465
    %1485 = vmatprep.subr.bf16.mxu0 0
    %1486 = vmatpush1.bf16.msra.mxu0 %v1466
    %1487 = vmatprep.subr.bf16.mxu0 0
    %1488 = vmatpush1.bf16.msra.mxu0 %v1467
    %1489 = vmatprep.subr.bf16.mxu0 0
    %1490 = vmatpush1.bf16.msra.mxu0 %v1468
    %1491 = vmatprep.subr.bf16.mxu0 0
    %1492 = vmatpush1.bf16.msra.mxu0 %v1469
    %1493 = vmatprep.subr.bf16.mxu0 0
    %1494 = vmatpush1.bf16.msra.mxu0 %v1470
    %1495 = vmatprep.subr.bf16.mxu0 0
    %1496 = vmatpush1.bf16.msra.mxu0 0
    %1497 = vmatprep.subr.bf16.mxu0 0
    %1498 = vmatpush1.bf16.msra.mxu0 0
    %1499 = vmatprep.subr.bf16.mxu0 0
    %1500 = vmatpush1.bf16.msra.mxu0 0
    %1501 = vmatprep.subr.bf16.mxu0 0
    %1502 = vmatpush1.bf16.msra.mxu0 0
    %1503 = vmatprep.subr.bf16.mxu0 0
    %1504 = vmatpush1.bf16.msra.mxu0 0
    %1505 = vmatprep.subr.bf16.mxu0 0
    %1506 = vmatpush1.bf16.msra.mxu0 0
    %1507 = vmatprep.subr.bf16.mxu0 0
    %1508 = vmatpush1.bf16.msra.mxu0 0
    %1509 = vmatprep.subr.bf16.mxu0 0
    %1510 = vmatpush1.bf16.msra.mxu0 0
    %1511 = vmatprep.mubr.bf16.mxu0 0
    %1512 = vmatmul.mubr.bf16.gmra.mrb[0].mxu0 %v69
    %v1513 = vpop.f32.mrb[0].mxu0
    %v1514 = vadd.f32 %v1429, %v1513
    %v1515 = vpop.f32.mrb[0].mxu0
    %v1516 = vpop.f32.mrb[0].mxu0
    %v1517 = vadd.f32 %v1429, %v1516
    %v1518 = vpop.f32.mrb[0].mxu0
    %1519 = vmatprep.mubr.bf16.mxu0 0
    %1520 = vmatmul.mubr.bf16.gmra.mrb[0].mxu0 %v70
    %v1521 = vpop.f32.mrb[0].mxu0
    %v1522 = vadd.f32 %v1429, %v1521
    %v1523 = vpop.f32.mrb[0].mxu0
    %v1524 = vpop.f32.mrb[0].mxu0
    %v1525 = vadd.f32 %v1429, %v1524
    %v1526 = vpop.f32.mrb[0].mxu0
    %1527 = vmatprep.mubr.bf16.mxu0 0
    %1528 = vmatmul.mubr.bf16.gmra.mrb[0].mxu0 %v71
    %v1529 = vpop.f32.mrb[0].mxu0
    %v1530 = vadd.f32 %v1429, %v1529
    %v1531 = vpop.f32.mrb[0].mxu0
    %v1532 = vpop.f32.mrb[0].mxu0
    %v1533 = vadd.f32 %v1429, %v1532
    %v1534 = vpop.f32.mrb[0].mxu0
    %1535 = vmatprep.mubr.bf16.mxu0 0
    %1536 = vmatmul.mubr.bf16.gmra.mrb[0].mxu0 %v72
    %v1537 = vpop.f32.mrb[0].mxu0
    %v1538 = vadd.f32 %v1429, %v1537
    %v1539 = vpop.f32.mrb[0].mxu0
    %v1540 = vpop.f32.mrb[0].mxu0
    %v1541 = vadd.f32 %v1429, %v1540
    %v1542 = vpop.f32.mrb[0].mxu0
    %1543 = vmatprep.mubr.bf16.mxu0 0
    %1544 = vmatmul.mubr.bf16.gmra.mrb[0].mxu0 %v73
    %v1545 = vpop.f32.mrb[0].mxu0
    %v1546 = vadd.f32 %v1429, %v1545
    %v1547 = vpop.f32.mrb[0].mxu0
    %v1548 = vpop.f32.mrb[0].mxu0
    %v1549 = vadd.f32 %v1429, %v1548
    %v1550 = vpop.f32.mrb[0].mxu0
    %1551 = vmatprep.mubr.bf16.mxu0 0
    %1552 = vmatmul.mubr.bf16.gmra.mrb[0].mxu0 %v74
    %v1553 = vpop.f32.mrb[0].mxu0
    %v1554 = vadd.f32 %v1429, %v1553
    %v1555 = vpop.f32.mrb[0].mxu0
    %v1556 = vpop.f32.mrb[0].mxu0
    %v1557 = vadd.f32 %v1429, %v1556
    %v1558 = vpop.f32.mrb[0].mxu0
    %1559 = vmatprep.mubr.bf16.mxu0 0
    %1560 = vmatmul.mubr.bf16.gmra.mrb[0].mxu0 %v75
    %v1561 = vpop.f32.mrb[0].mxu0
    %v1562 = vadd.f32 %v1429, %v1561
    %v1563 = vpop.f32.mrb[0].mxu0
    %v1564 = vpop.f32.mrb[0].mxu0
    %v1565 = vadd.f32 %v1429, %v1564
    %v1566 = vpop.f32.mrb[0].mxu0
    %1567 = vmatprep.mubr.bf16.mxu0 0
    %1568 = vmatmul.mubr.bf16.gmra.mrb[0].mxu0 %v76
    %v1569 = vpop.f32.mrb[0].mxu0
    %v1570 = vadd.f32 %v1429, %v1569
    %v1571 = vpop.f32.mrb[0].mxu0
    %v1572 = vpop.f32.mrb[0].mxu0
    %v1573 = vadd.f32 %v1429, %v1572
    %v1574 = vpop.f32.mrb[0].mxu0
    %1575 = vdwg.mxu0
    %v1576 = vadd.f32 %v1514, %v1008
    %v1577 = vadd.f32 %v1517, %v1009
    %v1578 = vadd.f32 %v1522, %v1010
    %v1579 = vadd.f32 %v1525, %v1011
    %v1580 = vadd.f32 %v1530, %v1012
    %v1581 = vadd.f32 %v1533, %v1013
    %v1582 = vadd.f32 %v1538, %v1014
    %v1583 = vadd.f32 %v1541, %v1015
    %v1584 = vadd.f32 %v1546, %v1016
    %v1585 = vadd.f32 %v1549, %v1017
    %v1586 = vadd.f32 %v1554, %v1018
    %v1587 = vadd.f32 %v1557, %v1019
    %v1588 = vadd.f32 %v1562, %v1020
    %v1589 = vadd.f32 %v1565, %v1021
    %v1590 = vadd.f32 %v1570, %v1022
    %v1591 = vadd.f32 %v1573, %v1023
    %1592 = vst [vmem:[#allocation7 + $0x10] sm:$0xff] %v1576
    %1593 = vst [vmem:[#allocation7 + $0x28] sm:$0xff] %v1577
    %1594 = vst [vmem:[#allocation7 + $0x40] sm:$0xff] %v1578
    %1595 = vst [vmem:[#allocation7 + $0x58] sm:$0xff] %v1579
    %1596 = vst [vmem:[#allocation7 + $0x70] sm:$0xff] %v1580
    %1597 = vst [vmem:[#allocation7 + $0x88] sm:$0xff] %v1581
    %1598 = vst [vmem:[#allocation7 + $0xa0] sm:$0xff] %v1582
    %1599 = vst [vmem:[#allocation7 + $0xb8] sm:$0xff] %v1583
    %1600 = vst [vmem:[#allocation7 + $0xd0] sm:$0xff] %v1584
    %1601 = vst [vmem:[#allocation7 + $0xe8] sm:$0xff] %v1585
    %1602 = vst [vmem:[#allocation7 + $0x100] sm:$0xff] %v1586
    %1603 = vst [vmem:[#allocation7 + $0x118] sm:$0xff] %v1587
    %1604 = vst [vmem:[#allocation7 + $0x130] sm:$0xff] %v1588
    %1605 = vst [vmem:[#allocation7 + $0x148] sm:$0xff] %v1589
    %1606 = vst [vmem:[#allocation7 + $0x160] sm:$0xff] %v1590
    %1607 = vst [vmem:[#allocation7 + $0x178] sm:$0xff] %v1591
    // Predicated region
    $region34: #{tpu_custom_call.1} parent=1 // pred_check
      _
    $region35: #{tpu_custom_call.1} parent=1 // pred_check_branch
      %1609 = sbr.rel (0) target = $region37
    $region36: #{tpu_custom_call.1} parent=1 // pred_region
      %s1611 = ssub.s32 6144, 6144
      %1612 = vsyncadd [#allocation4], %s1611
      %s1613 = sshll.u32 [#allocation7], 4
      %s1614 = int_to_ptr.vmem [resolvable:$true] %s1613
      %1619 = dma.vmem_to_hbm [thread:$0]  %s1614, 6144, %s6, [#allocation4], 384, 384, 24
    $region37: #{tpu_custom_call.1} parent=1 // pred_fallthru
      _
    // Predicated region
    $region38: #{tpu_custom_call.1} parent=1 // pred_check
      _
    $region39: #{tpu_custom_call.1} parent=1 // pred_check_branch
      %1621 = sbr.rel (0) target = $region41
    $region40: #{tpu_custom_call.1} parent=1 // pred_region
      %1622 = dma.done [#allocation4], 6144
    $region41: #{tpu_custom_call.1} parent=1 // pred_fallthru
      _
    %1623 = vsyncpa [#allocation3], 1
    %1624 = vsyncpa [#allocation6], 1
    %1625 = vsyncpa [#allocation4], 1

</llo_original>
